<compile_context>
chip_gen: v5e
topology: v5e:2x2
jax: 0.10.0
libtpu: 0.0.40
codegen_flags: <defaults>
</compile_context>

<pallas_src>
import functools

import numpy as np
import jax
import jax.numpy as jnp
from jax import lax
from jax.experimental import pallas as pl
from jax.experimental.pallas import tpu as pltpu

NEG_SLOPE = 0.01                      # nn.LeakyReLU() default negative_slope
KERNEL_SIZE = (2, 3)                  # (KH, KW)
STRIDE = (1, 2)                       # (SH, SW)
CHL_SEQ = (64, 64, 32, 16, 1)
OUTPUT_PADDING_SEQ = ((0, 0), (0, 0), (0, 1), (0, 0))
ACTIVATION_SEQ = ("leaky_relu", "leaky_relu", "leaky_relu", "sigmoid")

LANE = 128
BLOCK_ROWS = 16                       # sublane rows reserved per batch element
MAX_BATCHES_PER_STEP = 8              # grid tile along the batch axis


def _round_up(x, m):
    return (x + m - 1) // m * m


def _layer_shapes(h0, w0):
    """Per-layer (h_in, w_in, h_out, w_out) for the fixed decoder config."""
    shapes, h, w = [], h0, w0
    for idx in range(len(CHL_SEQ) - 1):
        oph, opw = OUTPUT_PADDING_SEQ[idx]
        h_out = (h - 1) * STRIDE[0] + KERNEL_SIZE[0] + oph
        w_out = (w - 1) * STRIDE[1] + KERNEL_SIZE[1] + opw
        shapes.append((h, w, h_out, w_out))
        h, w = h_out, w_out
    return shapes


# --------------------- once-per-model weight preprocessing ----------------- #
def prepare_decoder_params(params, input_hw):
    """Turn each ConvTranspose2d weight (Cin, Cout, KH, KW) into KH constant
    matrices G_kh of shape (W_in*Cin, W_out*Cout):

        G_kh[iw*Cin + ci, ow*Cout + co] = W[ci, co, kh, ow - SW*iw]
        (zero when ow - SW*iw is outside [0, KW))

    With activations laid out as (rows=H, lanes=W*C), the whole W-direction
    transposed conv (stride-2 dilation + output_padding) is a GEMM per H tap.
    """
    kh_sz, kw_sz = KERNEL_SIZE
    assert kh_sz == 2 and STRIDE[0] == 1, "H-tap handling assumes KH=2, SH=1"
    shapes = _layer_shapes(*input_hw)
    assert max(s[2] for s in shapes) + 1 <= BLOCK_ROWS
    layers = []
    for (wgt, bias, _, act), (h_in, w_in, h_out, w_out) in zip(params, shapes):
        cin, cout = int(wgt.shape[0]), int(wgt.shape[1])
        l_in, l_out = w_in * cin, w_out * cout
        l_in_pad, l_out_pad = _round_up(l_in, LANE), _round_up(l_out, LANE)
        wnp = np.asarray(wgt, dtype=np.float32)
        g = np.zeros((kh_sz, l_in_pad, l_out_pad), np.float32)
        for kh in range(kh_sz):
            for iw in range(w_in):
                for kw in range(kw_sz):
                    ow = STRIDE[1] * iw + kw
                    if ow < w_out:
                        g[kh, iw * cin:(iw + 1) * cin,
                          ow * cout:(ow + 1) * cout] = wnp[:, :, kh, kw]
        b_row = np.zeros((1, l_out_pad), np.float32)
        b_row[0, :l_out] = np.tile(np.asarray(bias, dtype=np.float32), w_out)
        layers.append(dict(
            g=jnp.asarray(g, dtype=jnp.bfloat16),
            bias=jnp.asarray(b_row, dtype=jnp.float32),
            act=act, h_in=h_in, w_in=w_in, h_out=h_out, w_out=w_out,
            cin=cin, cout=cout, l_in=l_in, l_out=l_out,
            l_in_pad=l_in_pad, l_out_pad=l_out_pad))
    return layers


# ----------------------------- Pallas kernel ------------------------------- #
def _decoder_fused_kernel(x_ref, s0_ref, s1_ref, s2_ref, s3_ref,
                          g0_ref, g1_ref, g2_ref, g3_ref,
                          b0_ref, b1_ref, b2_ref, b3_ref,
                          o_ref, *, acts, h_outs):
    """All four (skip-add -> ConvTranspose2d -> activation) layers, one step.

    Activation layout: (m, W*C) f32; H sits on sublane rows inside
    BLOCK_ROWS-row per-batch blocks (row 0 and rows > H are zero padding),
    (W, C) is packed on lanes.
    """
    m = x_ref.shape[0]
    f32 = jnp.float32

    # Exact sub-diagonal shift matrix: (S @ T)[r] = T[r-1], row 0 -> 0.
    # Implements the kh=1 H-tap (input row ih = oh - 1) purely on the MXU.
    row_i = lax.broadcasted_iota(jnp.int32, (m, m), 0)
    col_i = lax.broadcasted_iota(jnp.int32, (m, m), 1)
    shift = jnp.where(row_i == col_i + 1, 1.0, 0.0).astype(jnp.bfloat16)

    skip_refs = (s0_ref, s1_ref, s2_ref, s3_ref)
    g_refs = (g0_ref, g1_ref, g2_ref, g3_ref)
    b_refs = (b0_ref, b1_ref, b2_ref, b3_ref)

    cur = x_ref[...].astype(f32)
    for idx in range(4):
        cur = cur + skip_refs[idx][...].astype(f32)          # in-kernel skip add
        xb = cur.astype(jnp.bfloat16)
        # Row-shifted copy (exact: S is 0/1 and xb is already bf16).
        xs = jnp.dot(shift, xb, preferred_element_type=f32).astype(jnp.bfloat16)
        y = jnp.dot(xb, g_refs[idx][0], preferred_element_type=f32)
        y = y + jnp.dot(xs, g_refs[idx][1], preferred_element_type=f32)
        y = y + b_refs[idx][...]
        if acts[idx] == "leaky_relu":
            y = jnp.maximum(y, NEG_SLOPE * y)                # slope < 1
        else:                                                # sigmoid
            y = pl.reciprocal(1.0 + jnp.exp(-y), approx=True)
        # Re-zero the per-batch padding rows (row 0 and rows > H_out) so they
        # serve as the next layer's H zero-padding.
        r_off = lax.broadcasted_iota(jnp.int32, y.shape, 0) % BLOCK_ROWS
        cur = jnp.where((r_off >= 1) & (r_off <= h_outs[idx]), y, 0.0)
    o_ref[...] = cur


# ------------------------------- wrapper ------------------------------------ #
def _to_block_layout(t_nchw, h, w, c, l_pad, n_pad):
    """NCHW -> (n_pad*BLOCK_ROWS, l_pad): H on rows at offset 1 inside each
    BLOCK_ROWS batch block, (W, C) packed on lanes, zeros elsewhere."""
    n = t_nchw.shape[0]
    t = jnp.transpose(t_nchw, (0, 2, 3, 1)).reshape(n, h, w * c)
    t = jnp.pad(t, ((0, n_pad - n),
                    (1, BLOCK_ROWS - 1 - h),
                    (0, l_pad - w * c)))
    return t.reshape(n_pad * BLOCK_ROWS, l_pad)


def conv2d_decoder_forward(x_nchw, skips_nchw, prepared):
    """Mirrors Conv2dDecoder.forward: x, skips in NCHW -> final NCHW tensor."""
    meta = prepared
    assert len(meta) == 4
    n = x_nchw.shape[0]
    last = meta[-1]

    # Batch tiling on a "parallel" grid axis: >=2 steps whenever N >= 2 (v7x
    # megacore), up to MAX_BATCHES_PER_STEP batches per step for larger N.
    bpb = max(1, min(MAX_BATCHES_PER_STEP, (n + 1) // 2))
    n_steps = -(-n // bpb)
    n_pad = n_steps * bpb
    m_step = bpb * BLOCK_ROWS
    m_total = n_pad * BLOCK_ROWS

    # TODO(synk): the NCHW -> (rows, W*C-lane) layout conversion of x / skips
    # and the final slice stay as thin XLA glue; everything else is in-kernel.
    skip_order = [skips_nchw[-(1 + i)] for i in range(len(meta))]
    x2d = _to_block_layout(x_nchw, meta[0]["h_in"], meta[0]["w_in"],
                           meta[0]["cin"], meta[0]["l_in_pad"], n_pad)
    skips2d = [_to_block_layout(s, lm["h_in"], lm["w_in"], lm["cin"],
                                lm["l_in_pad"], n_pad)
               for s, lm in zip(skip_order, meta)]

    def data_spec(lanes):
        return pl.BlockSpec((m_step, lanes), lambda i: (i, 0))

    in_specs = (
        [data_spec(meta[0]["l_in_pad"])]
        + [data_spec(lm["l_in_pad"]) for lm in meta]
        + [pl.BlockSpec(lm["g"].shape, lambda i: (0, 0, 0)) for lm in meta]
        + [pl.BlockSpec(lm["bias"].shape, lambda i: (0, 0)) for lm in meta])
    out_spec = data_spec(last["l_out_pad"])

    flops = 0
    for lm in meta:
        flops += 2 * 2 * m_total * lm["l_in_pad"] * lm["l_out_pad"]  # 2 H taps
        flops += 2 * m_total * m_step * lm["l_in_pad"]               # row shift
    bytes_accessed = int(
        x2d.size * 4 + sum(s.size * 4 for s in skips2d)
        + sum(lm["g"].size * 2 + lm["bias"].size * 4 for lm in meta)
        + m_total * last["l_out_pad"] * 4)
    cost = pl.CostEstimate(flops=int(flops),
                           transcendentals=int(2 * m_total * last["l_out_pad"]),
                           bytes_accessed=bytes_accessed)

    kernel = functools.partial(
        _decoder_fused_kernel,
        acts=tuple(lm["act"] for lm in meta),
        h_outs=tuple(lm["h_out"] for lm in meta))

    out2d = pl.pallas_call(
        kernel,
        out_shape=jax.ShapeDtypeStruct((m_total, last["l_out_pad"]), jnp.float32),
        grid_spec=pltpu.PrefetchScalarGridSpec(
            num_scalar_prefetch=0,
            grid=(n_steps,),
            in_specs=in_specs,
            out_specs=out_spec),
        compiler_params=pltpu.CompilerParams(
            dimension_semantics=("parallel",)),
        cost_estimate=cost,
    )(x2d, *skips2d, *[lm["g"] for lm in meta], *[lm["bias"] for lm in meta])

    out = out2d.reshape(n_pad, BLOCK_ROWS, last["l_out_pad"])
    out = out[:n, 1:1 + last["h_out"], :last["l_out"]]
    out = out.reshape(n, last["h_out"], last["w_out"], last["cout"])
    return jnp.transpose(out, (0, 3, 1, 2))                  # NHWC -> NCHW


# ------------------------- params & pure-XLA reference --------------------- #
def init_params(key):
    """Deterministic ConvTranspose2d params (PyTorch-like uniform init)."""
    params = []
    kh, kw = KERNEL_SIZE
    for idx in range(len(CHL_SEQ) - 1):
        cin, cout = CHL_SEQ[idx], CHL_SEQ[idx + 1]
        key, wk, bk = jax.random.split(key, 3)
        bound = 1.0 / np.sqrt(cin * kh * kw)
        w = jax.random.uniform(wk, (cin, cout, kh, kw), jnp.float32,
                               -bound, bound)
        b = jax.random.uniform(bk, (cout,), jnp.float32, -bound, bound)
        params.append((w, b, OUTPUT_PADDING_SEQ[idx], ACTIVATION_SEQ[idx]))
    return params


def reference_forward(x_nchw, skips_nchw, params):
    """Pure-XLA reference (lax.conv_general_dilated) for validation."""
    kh, kw = KERNEL_SIZE
    x = x_nchw
    for idx, (w, b, (oph, opw), act) in enumerate(params):
        x = x + skips_nchw[-(1 + idx)]
        # ConvTranspose2d == lhs-dilated conv with spatially flipped kernel.
        w_conv = jnp.transpose(jnp.flip(w, axis=(2, 3)), (1, 0, 2, 3))
        x = lax.conv_general_dilated(
            x, w_conv, window_strides=(1, 1),
            padding=((kh - 1, kh - 1 + oph), (kw - 1, kw - 1 + opw)),
            lhs_dilation=STRIDE,
            dimension_numbers=("NCHW", "OIHW", "NCHW"),
            precision=lax.Precision.HIGHEST)
        x = x + b.reshape(1, -1, 1, 1)
        if act == "leaky_relu":
            x = jnp.where(x >= 0, x, NEG_SLOPE * x)
        else:
            x = 1.0 / (1.0 + jnp.exp(-x))
    return x


if __name__ == "__main__":
    root = jax.random.PRNGKey(0)
    keys = jax.random.split(root, 6)
    N = 2
    # Shapes mirroring the DTLN encoder/decoder pair (encoder run on
    # (N,1,8,33)): decoder input = encoder output, skips = encoder outputs.
    x = jax.random.normal(keys[0], (N, 64, 4, 1), jnp.float32)
    skip_shapes = [(N, 16, 7, 16), (N, 32, 6, 7), (N, 64, 5, 3), (N, 64, 4, 1)]
    skips = [jax.random.normal(k, s, jnp.float32)
             for k, s in zip(keys[1:5], skip_shapes)]
    params = init_params(keys[5])

    prepared = prepare_decoder_params(params, input_hw=x.shape[2:])
    out = conv2d_decoder_forward(x, skips, prepared)
    out = jax.block_until_ready(out)

    ref = reference_forward(x, skips, params)
    assert out.shape == ref.shape, (out.shape, ref.shape)
    # bf16 MXU operands across the 4 chained layers vs the f32 HIGHEST
    # reference; the final sigmoid keeps the error well below this tolerance.
    np.testing.assert_allclose(np.asarray(out), np.asarray(ref),
                               rtol=2e-2, atol=2e-2)
    print("KERNEL_OK")
</pallas_src>

<mosaic_0001>
module attributes {stable_mosaic.version = 11 : i64} {
  func.func @_decoder_fused_kernel(%arg0: i32, %arg1: memref<16x128xf32, #tpu.memory_space<vmem>>, %arg2: memref<16x128xf32, #tpu.memory_space<vmem>>, %arg3: memref<16x256xf32, #tpu.memory_space<vmem>>, %arg4: memref<16x256xf32, #tpu.memory_space<vmem>>, %arg5: memref<16x256xf32, #tpu.memory_space<vmem>>, %arg6: memref<2x128x256xbf16, #tpu.memory_space<vmem>>, %arg7: memref<2x256x256xbf16, #tpu.memory_space<vmem>>, %arg8: memref<2x256x256xbf16, #tpu.memory_space<vmem>>, %arg9: memref<2x256x128xbf16, #tpu.memory_space<vmem>>, %arg10: memref<1x256xf32, #tpu.memory_space<vmem>>, %arg11: memref<1x256xf32, #tpu.memory_space<vmem>>, %arg12: memref<1x256xf32, #tpu.memory_space<vmem>>, %arg13: memref<1x128xf32, #tpu.memory_space<vmem>>, %arg14: memref<16x128xf32, #tpu.memory_space<vmem>>) attributes {dimension_semantics = [#tpu.dimension_semantics<parallel>], iteration_bounds = array<i64: 2>, scalar_prefetch = 0 : i64, scratch_operands = 0 : i64, tpu.core_type = #tpu.core_type<tc>, window_params = [{transform_indices = @transform_0, window_bounds = array<i64: 16, 128>}, {transform_indices = @transform_1, window_bounds = array<i64: 16, 128>}, {transform_indices = @transform_2, window_bounds = array<i64: 16, 256>}, {transform_indices = @transform_3, window_bounds = array<i64: 16, 256>}, {transform_indices = @transform_4, window_bounds = array<i64: 16, 256>}, {pipeline_mode = #tpu.pipeline_mode<synchronous>, transform_indices = @transform_5, window_bounds = array<i64: 2, 128, 256>}, {pipeline_mode = #tpu.pipeline_mode<synchronous>, transform_indices = @transform_6, window_bounds = array<i64: 2, 256, 256>}, {pipeline_mode = #tpu.pipeline_mode<synchronous>, transform_indices = @transform_7, window_bounds = array<i64: 2, 256, 256>}, {pipeline_mode = #tpu.pipeline_mode<synchronous>, transform_indices = @transform_8, window_bounds = array<i64: 2, 256, 128>}, {pipeline_mode = #tpu.pipeline_mode<synchronous>, transform_indices = @transform_9, window_bounds = array<i64: 1, 256>}, {pipeline_mode = #tpu.pipeline_mode<synchronous>, transform_indices = @transform_10, window_bounds = array<i64: 1, 256>}, {pipeline_mode = #tpu.pipeline_mode<synchronous>, transform_indices = @transform_11, window_bounds = array<i64: 1, 256>}, {pipeline_mode = #tpu.pipeline_mode<synchronous>, transform_indices = @transform_12, window_bounds = array<i64: 1, 128>}, {transform_indices = @transform_13, window_bounds = array<i64: 16, 128>}]} {
    %0 = tpu.iota {dimensions = array<i32: 0>} : vector<16x16xi32>
    %1 = tpu.iota {dimensions = array<i32: 1>} : vector<16x16xi32>
    %c1_i32 = arith.constant 1 : i32
    %2 = vector.broadcast %c1_i32 : i32 to vector<16x16xi32>
    %3 = arith.addi %1, %2 : vector<16x16xi32>
    %4 = arith.cmpi eq, %0, %3 : vector<16x16xi32>
    %cst = arith.constant 1.000000e+00 : f32
    %cst_0 = arith.constant 0.000000e+00 : f32
    %5 = vector.broadcast %cst : f32 to vector<16x16xf32>
    %6 = vector.broadcast %cst_0 : f32 to vector<16x16xf32>
    %7 = arith.select %4, %5, %6 : vector<16x16xi1>, vector<16x16xf32>
    %8 = arith.truncf %7 : vector<16x16xf32> to vector<16x16xbf16>
    %c0 = arith.constant 0 : index
    %c0_1 = arith.constant 0 : index
    %9 = vector.load %arg1[%c0, %c0_1] : memref<16x128xf32, #tpu.memory_space<vmem>>, vector<16x128xf32>
    %c0_2 = arith.constant 0 : index
    %c0_3 = arith.constant 0 : index
    %10 = vector.load %arg2[%c0_2, %c0_3] : memref<16x128xf32, #tpu.memory_space<vmem>>, vector<16x128xf32>
    %11 = arith.addf %9, %10 : vector<16x128xf32>
    %12 = arith.truncf %11 : vector<16x128xf32> to vector<16x128xbf16>
    %cst_4 = arith.constant dense<0.000000e+00> : vector<16x128xf32>
    %13 = tpu.matmul %8, %12, %cst_4 {dimension_numbers = #tpu.dot_dimension_numbers<[1], [0], [0], [1], [0, 0, 1, 1], [], []>} : vector<16x16xbf16>, vector<16x128xbf16>, vector<16x128xf32> -> vector<16x128xf32>
    %14 = arith.truncf %13 : vector<16x128xf32> to vector<16x128xbf16>
    %c0_5 = arith.constant 0 : index
    %c0_6 = arith.constant 0 : index
    %c0_7 = arith.constant 0 : index
    %15 = vector.load %arg6[%c0_5, %c0_6, %c0_7] : memref<2x128x256xbf16, #tpu.memory_space<vmem>>, vector<1x128x256xbf16>
    %16 = vector.shape_cast %15 : vector<1x128x256xbf16> to vector<128x256xbf16>
    %cst_8 = arith.constant dense<0.000000e+00> : vector<16x256xf32>
    %17 = tpu.matmul %12, %16, %cst_8 {dimension_numbers = #tpu.dot_dimension_numbers<[1], [0], [0], [1], [0, 0, 1, 1], [], []>} : vector<16x128xbf16>, vector<128x256xbf16>, vector<16x256xf32> -> vector<16x256xf32>
    %c1 = arith.constant 1 : index
    %c0_9 = arith.constant 0 : index
    %c0_10 = arith.constant 0 : index
    %18 = vector.load %arg6[%c1, %c0_9, %c0_10] : memref<2x128x256xbf16, #tpu.memory_space<vmem>>, vector<1x128x256xbf16>
    %19 = vector.shape_cast %18 : vector<1x128x256xbf16> to vector<128x256xbf16>
    %cst_11 = arith.constant dense<0.000000e+00> : vector<16x256xf32>
    %20 = tpu.matmul %14, %19, %cst_11 {dimension_numbers = #tpu.dot_dimension_numbers<[1], [0], [0], [1], [0, 0, 1, 1], [], []>} : vector<16x128xbf16>, vector<128x256xbf16>, vector<16x256xf32> -> vector<16x256xf32>
    %21 = arith.addf %17, %20 : vector<16x256xf32>
    %c0_12 = arith.constant 0 : index
    %c0_13 = arith.constant 0 : index
    %22 = vector.load %arg10[%c0_12, %c0_13] : memref<1x256xf32, #tpu.memory_space<vmem>>, vector<1x256xf32>
    %23 = vector.broadcast %22 : vector<1x256xf32> to vector<16x256xf32>
    %24 = arith.addf %21, %23 : vector<16x256xf32>
    %cst_14 = arith.constant 0.00999999977 : f32
    %25 = vector.broadcast %cst_14 : f32 to vector<16x256xf32>
    %26 = arith.mulf %25, %24 : vector<16x256xf32>
    %27 = arith.maximumf %24, %26 : vector<16x256xf32>
    %28 = tpu.iota {dimensions = array<i32: 0>} : vector<16x256xi32>
    %c16_i32 = arith.constant 16 : i32
    %c0_i32 = arith.constant 0 : i32
    %29 = arith.cmpi eq, %c16_i32, %c0_i32 : i32
    %c1_i32_15 = arith.constant 1 : i32
    %30 = arith.select %29, %c1_i32_15, %c16_i32 : i32
    %31 = vector.broadcast %30 : i32 to vector<16x256xi32>
    %32 = arith.remsi %28, %31 : vector<16x256xi32>
    %c0_i32_16 = arith.constant 0 : i32
    %33 = vector.broadcast %c0_i32_16 : i32 to vector<16x256xi32>
    %34 = arith.cmpi ne, %32, %33 : vector<16x256xi32>
    %c0_i32_17 = arith.constant 0 : i32
    %35 = vector.broadcast %c0_i32_17 : i32 to vector<16x256xi32>
    %36 = arith.cmpi slt, %32, %35 : vector<16x256xi32>
    %c0_i32_18 = arith.constant 0 : i32
    %37 = arith.cmpi slt, %30, %c0_i32_18 : i32
    %38 = vector.broadcast %37 : i1 to vector<16x256xi1>
    %39 = vector.broadcast %38 : vector<16x256xi1> to vector<16x256xi1>
    %40 = arith.xori %36, %39 : vector<16x256xi1>
    %41 = arith.andi %40, %34 : vector<16x256xi1>
    %42 = vector.broadcast %30 : i32 to vector<16x256xi32>
    %43 = arith.addi %32, %42 : vector<16x256xi32>
    %44 = arith.select %41, %43, %32 : vector<16x256xi1>, vector<16x256xi32>
    %c1_i32_19 = arith.constant 1 : i32
    %45 = vector.broadcast %c1_i32_19 : i32 to vector<16x256xi32>
    %46 = arith.cmpi sge, %44, %45 : vector<16x256xi32>
    %c5_i32 = arith.constant 5 : i32
    %47 = vector.broadcast %c5_i32 : i32 to vector<16x256xi32>
    %48 = arith.cmpi sle, %44, %47 : vector<16x256xi32>
    %49 = arith.andi %46, %48 : vector<16x256xi1>
    %cst_20 = arith.constant 0.000000e+00 : f32
    %50 = vector.broadcast %cst_20 : f32 to vector<16x256xf32>
    %51 = arith.select %49, %27, %50 : vector<16x256xi1>, vector<16x256xf32>
    %c0_21 = arith.constant 0 : index
    %c0_22 = arith.constant 0 : index
    %52 = vector.load %arg3[%c0_21, %c0_22] : memref<16x256xf32, #tpu.memory_space<vmem>>, vector<16x256xf32>
    %53 = arith.addf %51, %52 : vector<16x256xf32>
    %54 = arith.truncf %53 : vector<16x256xf32> to vector<16x256xbf16>
    %cst_23 = arith.constant dense<0.000000e+00> : vector<16x256xf32>
    %55 = tpu.matmul %8, %54, %cst_23 {dimension_numbers = #tpu.dot_dimension_numbers<[1], [0], [0], [1], [0, 0, 1, 1], [], []>} : vector<16x16xbf16>, vector<16x256xbf16>, vector<16x256xf32> -> vector<16x256xf32>
    %56 = arith.truncf %55 : vector<16x256xf32> to vector<16x256xbf16>
    %c0_24 = arith.constant 0 : index
    %c0_25 = arith.constant 0 : index
    %c0_26 = arith.constant 0 : index
    %57 = vector.load %arg7[%c0_24, %c0_25, %c0_26] : memref<2x256x256xbf16, #tpu.memory_space<vmem>>, vector<1x256x256xbf16>
    %58 = vector.shape_cast %57 : vector<1x256x256xbf16> to vector<256x256xbf16>
    %cst_27 = arith.constant dense<0.000000e+00> : vector<16x256xf32>
    %59 = tpu.matmul %54, %58, %cst_27 {dimension_numbers = #tpu.dot_dimension_numbers<[1], [0], [0], [1], [0, 0, 1, 1], [], []>} : vector<16x256xbf16>, vector<256x256xbf16>, vector<16x256xf32> -> vector<16x256xf32>
    %c1_28 = arith.constant 1 : index
    %c0_29 = arith.constant 0 : index
    %c0_30 = arith.constant 0 : index
    %60 = vector.load %arg7[%c1_28, %c0_29, %c0_30] : memref<2x256x256xbf16, #tpu.memory_space<vmem>>, vector<1x256x256xbf16>
    %61 = vector.shape_cast %60 : vector<1x256x256xbf16> to vector<256x256xbf16>
    %cst_31 = arith.constant dense<0.000000e+00> : vector<16x256xf32>
    %62 = tpu.matmul %56, %61, %cst_31 {dimension_numbers = #tpu.dot_dimension_numbers<[1], [0], [0], [1], [0, 0, 1, 1], [], []>} : vector<16x256xbf16>, vector<256x256xbf16>, vector<16x256xf32> -> vector<16x256xf32>
    %63 = arith.addf %59, %62 : vector<16x256xf32>
    %c0_32 = arith.constant 0 : index
    %c0_33 = arith.constant 0 : index
    %64 = vector.load %arg11[%c0_32, %c0_33] : memref<1x256xf32, #tpu.memory_space<vmem>>, vector<1x256xf32>
    %65 = vector.broadcast %64 : vector<1x256xf32> to vector<16x256xf32>
    %66 = arith.addf %63, %65 : vector<16x256xf32>
    %cst_34 = arith.constant 0.00999999977 : f32
    %67 = vector.broadcast %cst_34 : f32 to vector<16x256xf32>
    %68 = arith.mulf %67, %66 : vector<16x256xf32>
    %69 = arith.maximumf %66, %68 : vector<16x256xf32>
    %70 = tpu.iota {dimensions = array<i32: 0>} : vector<16x256xi32>
    %c16_i32_35 = arith.constant 16 : i32
    %c0_i32_36 = arith.constant 0 : i32
    %71 = arith.cmpi eq, %c16_i32_35, %c0_i32_36 : i32
    %c1_i32_37 = arith.constant 1 : i32
    %72 = arith.select %71, %c1_i32_37, %c16_i32_35 : i32
    %73 = vector.broadcast %72 : i32 to vector<16x256xi32>
    %74 = arith.remsi %70, %73 : vector<16x256xi32>
    %c0_i32_38 = arith.constant 0 : i32
    %75 = vector.broadcast %c0_i32_38 : i32 to vector<16x256xi32>
    %76 = arith.cmpi ne, %74, %75 : vector<16x256xi32>
    %c0_i32_39 = arith.constant 0 : i32
    %77 = vector.broadcast %c0_i32_39 : i32 to vector<16x256xi32>
    %78 = arith.cmpi slt, %74, %77 : vector<16x256xi32>
    %c0_i32_40 = arith.constant 0 : i32
    %79 = arith.cmpi slt, %72, %c0_i32_40 : i32
    %80 = vector.broadcast %79 : i1 to vector<16x256xi1>
    %81 = vector.broadcast %80 : vector<16x256xi1> to vector<16x256xi1>
    %82 = arith.xori %78, %81 : vector<16x256xi1>
    %83 = arith.andi %82, %76 : vector<16x256xi1>
    %84 = vector.broadcast %72 : i32 to vector<16x256xi32>
    %85 = arith.addi %74, %84 : vector<16x256xi32>
    %86 = arith.select %83, %85, %74 : vector<16x256xi1>, vector<16x256xi32>
    %c1_i32_41 = arith.constant 1 : i32
    %87 = vector.broadcast %c1_i32_41 : i32 to vector<16x256xi32>
    %88 = arith.cmpi sge, %86, %87 : vector<16x256xi32>
    %c6_i32 = arith.constant 6 : i32
    %89 = vector.broadcast %c6_i32 : i32 to vector<16x256xi32>
    %90 = arith.cmpi sle, %86, %89 : vector<16x256xi32>
    %91 = arith.andi %88, %90 : vector<16x256xi1>
    %cst_42 = arith.constant 0.000000e+00 : f32
    %92 = vector.broadcast %cst_42 : f32 to vector<16x256xf32>
    %93 = arith.select %91, %69, %92 : vector<16x256xi1>, vector<16x256xf32>
    %c0_43 = arith.constant 0 : index
    %c0_44 = arith.constant 0 : index
    %94 = vector.load %arg4[%c0_43, %c0_44] : memref<16x256xf32, #tpu.memory_space<vmem>>, vector<16x256xf32>
    %95 = arith.addf %93, %94 : vector<16x256xf32>
    %96 = arith.truncf %95 : vector<16x256xf32> to vector<16x256xbf16>
    %cst_45 = arith.constant dense<0.000000e+00> : vector<16x256xf32>
    %97 = tpu.matmul %8, %96, %cst_45 {dimension_numbers = #tpu.dot_dimension_numbers<[1], [0], [0], [1], [0, 0, 1, 1], [], []>} : vector<16x16xbf16>, vector<16x256xbf16>, vector<16x256xf32> -> vector<16x256xf32>
    %98 = arith.truncf %97 : vector<16x256xf32> to vector<16x256xbf16>
    %c0_46 = arith.constant 0 : index
    %c0_47 = arith.constant 0 : index
    %c0_48 = arith.constant 0 : index
    %99 = vector.load %arg8[%c0_46, %c0_47, %c0_48] : memref<2x256x256xbf16, #tpu.memory_space<vmem>>, vector<1x256x256xbf16>
    %100 = vector.shape_cast %99 : vector<1x256x256xbf16> to vector<256x256xbf16>
    %cst_49 = arith.constant dense<0.000000e+00> : vector<16x256xf32>
    %101 = tpu.matmul %96, %100, %cst_49 {dimension_numbers = #tpu.dot_dimension_numbers<[1], [0], [0], [1], [0, 0, 1, 1], [], []>} : vector<16x256xbf16>, vector<256x256xbf16>, vector<16x256xf32> -> vector<16x256xf32>
    %c1_50 = arith.constant 1 : index
    %c0_51 = arith.constant 0 : index
    %c0_52 = arith.constant 0 : index
    %102 = vector.load %arg8[%c1_50, %c0_51, %c0_52] : memref<2x256x256xbf16, #tpu.memory_space<vmem>>, vector<1x256x256xbf16>
    %103 = vector.shape_cast %102 : vector<1x256x256xbf16> to vector<256x256xbf16>
    %cst_53 = arith.constant dense<0.000000e+00> : vector<16x256xf32>
    %104 = tpu.matmul %98, %103, %cst_53 {dimension_numbers = #tpu.dot_dimension_numbers<[1], [0], [0], [1], [0, 0, 1, 1], [], []>} : vector<16x256xbf16>, vector<256x256xbf16>, vector<16x256xf32> -> vector<16x256xf32>
    %105 = arith.addf %101, %104 : vector<16x256xf32>
    %c0_54 = arith.constant 0 : index
    %c0_55 = arith.constant 0 : index
    %106 = vector.load %arg12[%c0_54, %c0_55] : memref<1x256xf32, #tpu.memory_space<vmem>>, vector<1x256xf32>
    %107 = vector.broadcast %106 : vector<1x256xf32> to vector<16x256xf32>
    %108 = arith.addf %105, %107 : vector<16x256xf32>
    %cst_56 = arith.constant 0.00999999977 : f32
    %109 = vector.broadcast %cst_56 : f32 to vector<16x256xf32>
    %110 = arith.mulf %109, %108 : vector<16x256xf32>
    %111 = arith.maximumf %108, %110 : vector<16x256xf32>
    %112 = tpu.iota {dimensions = array<i32: 0>} : vector<16x256xi32>
    %c16_i32_57 = arith.constant 16 : i32
    %c0_i32_58 = arith.constant 0 : i32
    %113 = arith.cmpi eq, %c16_i32_57, %c0_i32_58 : i32
    %c1_i32_59 = arith.constant 1 : i32
    %114 = arith.select %113, %c1_i32_59, %c16_i32_57 : i32
    %115 = vector.broadcast %114 : i32 to vector<16x256xi32>
    %116 = arith.remsi %112, %115 : vector<16x256xi32>
    %c0_i32_60 = arith.constant 0 : i32
    %117 = vector.broadcast %c0_i32_60 : i32 to vector<16x256xi32>
    %118 = arith.cmpi ne, %116, %117 : vector<16x256xi32>
    %c0_i32_61 = arith.constant 0 : i32
    %119 = vector.broadcast %c0_i32_61 : i32 to vector<16x256xi32>
    %120 = arith.cmpi slt, %116, %119 : vector<16x256xi32>
    %c0_i32_62 = arith.constant 0 : i32
    %121 = arith.cmpi slt, %114, %c0_i32_62 : i32
    %122 = vector.broadcast %121 : i1 to vector<16x256xi1>
    %123 = vector.broadcast %122 : vector<16x256xi1> to vector<16x256xi1>
    %124 = arith.xori %120, %123 : vector<16x256xi1>
    %125 = arith.andi %124, %118 : vector<16x256xi1>
    %126 = vector.broadcast %114 : i32 to vector<16x256xi32>
    %127 = arith.addi %116, %126 : vector<16x256xi32>
    %128 = arith.select %125, %127, %116 : vector<16x256xi1>, vector<16x256xi32>
    %c1_i32_63 = arith.constant 1 : i32
    %129 = vector.broadcast %c1_i32_63 : i32 to vector<16x256xi32>
    %130 = arith.cmpi sge, %128, %129 : vector<16x256xi32>
    %c7_i32 = arith.constant 7 : i32
    %131 = vector.broadcast %c7_i32 : i32 to vector<16x256xi32>
    %132 = arith.cmpi sle, %128, %131 : vector<16x256xi32>
    %133 = arith.andi %130, %132 : vector<16x256xi1>
    %cst_64 = arith.constant 0.000000e+00 : f32
    %134 = vector.broadcast %cst_64 : f32 to vector<16x256xf32>
    %135 = arith.select %133, %111, %134 : vector<16x256xi1>, vector<16x256xf32>
    %c0_65 = arith.constant 0 : index
    %c0_66 = arith.constant 0 : index
    %136 = vector.load %arg5[%c0_65, %c0_66] : memref<16x256xf32, #tpu.memory_space<vmem>>, vector<16x256xf32>
    %137 = arith.addf %135, %136 : vector<16x256xf32>
    %138 = arith.truncf %137 : vector<16x256xf32> to vector<16x256xbf16>
    %cst_67 = arith.constant dense<0.000000e+00> : vector<16x256xf32>
    %139 = tpu.matmul %8, %138, %cst_67 {dimension_numbers = #tpu.dot_dimension_numbers<[1], [0], [0], [1], [0, 0, 1, 1], [], []>} : vector<16x16xbf16>, vector<16x256xbf16>, vector<16x256xf32> -> vector<16x256xf32>
    %140 = arith.truncf %139 : vector<16x256xf32> to vector<16x256xbf16>
    %c0_68 = arith.constant 0 : index
    %c0_69 = arith.constant 0 : index
    %c0_70 = arith.constant 0 : index
    %141 = vector.load %arg9[%c0_68, %c0_69, %c0_70] : memref<2x256x128xbf16, #tpu.memory_space<vmem>>, vector<1x256x128xbf16>
    %142 = vector.shape_cast %141 : vector<1x256x128xbf16> to vector<256x128xbf16>
    %cst_71 = arith.constant dense<0.000000e+00> : vector<16x128xf32>
    %143 = tpu.matmul %138, %142, %cst_71 {dimension_numbers = #tpu.dot_dimension_numbers<[1], [0], [0], [1], [0, 0, 1, 1], [], []>} : vector<16x256xbf16>, vector<256x128xbf16>, vector<16x128xf32> -> vector<16x128xf32>
    %c1_72 = arith.constant 1 : index
    %c0_73 = arith.constant 0 : index
    %c0_74 = arith.constant 0 : index
    %144 = vector.load %arg9[%c1_72, %c0_73, %c0_74] : memref<2x256x128xbf16, #tpu.memory_space<vmem>>, vector<1x256x128xbf16>
    %145 = vector.shape_cast %144 : vector<1x256x128xbf16> to vector<256x128xbf16>
    %cst_75 = arith.constant dense<0.000000e+00> : vector<16x128xf32>
    %146 = tpu.matmul %140, %145, %cst_75 {dimension_numbers = #tpu.dot_dimension_numbers<[1], [0], [0], [1], [0, 0, 1, 1], [], []>} : vector<16x256xbf16>, vector<256x128xbf16>, vector<16x128xf32> -> vector<16x128xf32>
    %147 = arith.addf %143, %146 : vector<16x128xf32>
    %c0_76 = arith.constant 0 : index
    %c0_77 = arith.constant 0 : index
    %148 = vector.load %arg13[%c0_76, %c0_77] : memref<1x128xf32, #tpu.memory_space<vmem>>, vector<1x128xf32>
    %149 = vector.broadcast %148 : vector<1x128xf32> to vector<16x128xf32>
    %150 = arith.addf %147, %149 : vector<16x128xf32>
    %cst_78 = arith.constant 0.000000e+00 : f32
    %151 = vector.broadcast %cst_78 : f32 to vector<16x128xf32>
    %152 = arith.subf %151, %150 : vector<16x128xf32>
    %153 = math.exp %152 : vector<16x128xf32>
    %cst_79 = arith.constant 1.000000e+00 : f32
    %154 = vector.broadcast %cst_79 : f32 to vector<16x128xf32>
    %155 = arith.addf %154, %153 : vector<16x128xf32>
    %156 = tpu.reciprocal %155 {approx = true} : vector<16x128xf32> -> vector<16x128xf32>
    %157 = tpu.iota {dimensions = array<i32: 0>} : vector<16x128xi32>
    %c16_i32_80 = arith.constant 16 : i32
    %c0_i32_81 = arith.constant 0 : i32
    %158 = arith.cmpi eq, %c16_i32_80, %c0_i32_81 : i32
    %c1_i32_82 = arith.constant 1 : i32
    %159 = arith.select %158, %c1_i32_82, %c16_i32_80 : i32
    %160 = vector.broadcast %159 : i32 to vector<16x128xi32>
    %161 = arith.remsi %157, %160 : vector<16x128xi32>
    %c0_i32_83 = arith.constant 0 : i32
    %162 = vector.broadcast %c0_i32_83 : i32 to vector<16x128xi32>
    %163 = arith.cmpi ne, %161, %162 : vector<16x128xi32>
    %c0_i32_84 = arith.constant 0 : i32
    %164 = vector.broadcast %c0_i32_84 : i32 to vector<16x128xi32>
    %165 = arith.cmpi slt, %161, %164 : vector<16x128xi32>
    %c0_i32_85 = arith.constant 0 : i32
    %166 = arith.cmpi slt, %159, %c0_i32_85 : i32
    %167 = vector.broadcast %166 : i1 to vector<16x128xi1>
    %168 = vector.broadcast %167 : vector<16x128xi1> to vector<16x128xi1>
    %169 = arith.xori %165, %168 : vector<16x128xi1>
    %170 = arith.andi %169, %163 : vector<16x128xi1>
    %171 = vector.broadcast %159 : i32 to vector<16x128xi32>
    %172 = arith.addi %161, %171 : vector<16x128xi32>
    %173 = arith.select %170, %172, %161 : vector<16x128xi1>, vector<16x128xi32>
    %c1_i32_86 = arith.constant 1 : i32
    %174 = vector.broadcast %c1_i32_86 : i32 to vector<16x128xi32>
    %175 = arith.cmpi sge, %173, %174 : vector<16x128xi32>
    %c8_i32 = arith.constant 8 : i32
    %176 = vector.broadcast %c8_i32 : i32 to vector<16x128xi32>
    %177 = arith.cmpi sle, %173, %176 : vector<16x128xi32>
    %178 = arith.andi %175, %177 : vector<16x128xi1>
    %cst_87 = arith.constant 0.000000e+00 : f32
    %179 = vector.broadcast %cst_87 : f32 to vector<16x128xf32>
    %180 = arith.select %178, %156, %179 : vector<16x128xi1>, vector<16x128xf32>
    %c0_88 = arith.constant 0 : index
    %c0_89 = arith.constant 0 : index
    %181 = vector.load %arg14[%c0_88, %c0_89] : memref<16x128xf32, #tpu.memory_space<vmem>>, vector<16x128xf32>
    tpu.vector_store %arg14[%c0_88, %c0_89], %180 {strides = array<i32>} : memref<16x128xf32, #tpu.memory_space<vmem>>, vector<16x128xf32>,
    return
  }
  func.func @transform_0(%arg0: i32) -> (i32, i32) {
    %c0_i32 = arith.constant 0 : i32
    %c0_i32_0 = arith.constant 0 : i32
    return %arg0, %c0_i32 : i32, i32
  }
  func.func @transform_1(%arg0: i32) -> (i32, i32) {
    %c0_i32 = arith.constant 0 : i32
    %c0_i32_0 = arith.constant 0 : i32
    return %arg0, %c0_i32 : i32, i32
  }
  func.func @transform_2(%arg0: i32) -> (i32, i32) {
    %c0_i32 = arith.constant 0 : i32
    %c0_i32_0 = arith.constant 0 : i32
    return %arg0, %c0_i32 : i32, i32
  }
  func.func @transform_3(%arg0: i32) -> (i32, i32) {
    %c0_i32 = arith.constant 0 : i32
    %c0_i32_0 = arith.constant 0 : i32
    return %arg0, %c0_i32 : i32, i32
  }
  func.func @transform_4(%arg0: i32) -> (i32, i32) {
    %c0_i32 = arith.constant 0 : i32
    %c0_i32_0 = arith.constant 0 : i32
    return %arg0, %c0_i32 : i32, i32
  }
  func.func @transform_5(%arg0: i32) -> (i32, i32, i32) {
    %c0_i32 = arith.constant 0 : i32
    %c0_i32_0 = arith.constant 0 : i32
    %c0_i32_1 = arith.constant 0 : i32
    %c0_i32_2 = arith.constant 0 : i32
    return %c0_i32, %c0_i32_0, %c0_i32_1 : i32, i32, i32
  }
  func.func @transform_6(%arg0: i32) -> (i32, i32, i32) {
    %c0_i32 = arith.constant 0 : i32
    %c0_i32_0 = arith.constant 0 : i32
    %c0_i32_1 = arith.constant 0 : i32
    %c0_i32_2 = arith.constant 0 : i32
    return %c0_i32, %c0_i32_0, %c0_i32_1 : i32, i32, i32
  }
  func.func @transform_7(%arg0: i32) -> (i32, i32, i32) {
    %c0_i32 = arith.constant 0 : i32
    %c0_i32_0 = arith.constant 0 : i32
    %c0_i32_1 = arith.constant 0 : i32
    %c0_i32_2 = arith.constant 0 : i32
    return %c0_i32, %c0_i32_0, %c0_i32_1 : i32, i32, i32
  }
  func.func @transform_8(%arg0: i32) -> (i32, i32, i32) {
    %c0_i32 = arith.constant 0 : i32
    %c0_i32_0 = arith.constant 0 : i32
    %c0_i32_1 = arith.constant 0 : i32
    %c0_i32_2 = arith.constant 0 : i32
    return %c0_i32, %c0_i32_0, %c0_i32_1 : i32, i32, i32
  }
  func.func @transform_9(%arg0: i32) -> (i32, i32) {
    %c0_i32 = arith.constant 0 : i32
    %c0_i32_0 = arith.constant 0 : i32
    %c0_i32_1 = arith.constant 0 : i32
    return %c0_i32, %c0_i32_0 : i32, i32
  }
  func.func @transform_10(%arg0: i32) -> (i32, i32) {
    %c0_i32 = arith.constant 0 : i32
    %c0_i32_0 = arith.constant 0 : i32
    %c0_i32_1 = arith.constant 0 : i32
    return %c0_i32, %c0_i32_0 : i32, i32
  }
  func.func @transform_11(%arg0: i32) -> (i32, i32) {
    %c0_i32 = arith.constant 0 : i32
    %c0_i32_0 = arith.constant 0 : i32
    %c0_i32_1 = arith.constant 0 : i32
    return %c0_i32, %c0_i32_0 : i32, i32
  }
  func.func @transform_12(%arg0: i32) -> (i32, i32) {
    %c0_i32 = arith.constant 0 : i32
    %c0_i32_0 = arith.constant 0 : i32
    %c0_i32_1 = arith.constant 0 : i32
    return %c0_i32, %c0_i32_0 : i32, i32
  }
  func.func @transform_13(%arg0: i32) -> (i32, i32) {
    %c0_i32 = arith.constant 0 : i32
    %c0_i32_0 = arith.constant 0 : i32
    return %arg0, %c0_i32 : i32, i32
  }
}

</mosaic_0001>

<llo_original>
// kernel: tpu_custom_call.1
$region0: #{tpu_custom_call.1}
  #allocation0 [shape = 'u32[]', space=smem, size = 0x4, offset = 0x4, fixed_abs, tag = 'smem constant byte address 0x4 - core index']
  #allocation1 [shape = 'u32[72,128]{1,0:T(1,128)}', space=vmem, size = 0x9000, scoped, tag = 'internal scratch']
  %s0 = inlined_call_operand.hbm [shape: f32[32,128], index: 0, kind: input, shape index: {}]
  %s1 = inlined_call_operand.hbm [shape: f32[32,128], index: 1, kind: input, shape index: {}]
  %s2 = inlined_call_operand.hbm [shape: f32[32,256], index: 2, kind: input, shape index: {}]
  %s3 = inlined_call_operand.hbm [shape: f32[32,256], index: 3, kind: input, shape index: {}]
  %s4 = inlined_call_operand.hbm [shape: f32[32,256], index: 4, kind: input, shape index: {}]
  %s5 = inlined_call_operand.hbm [shape: bf16[2,128,256], index: 5, kind: input, shape index: {}]
  %s6 = inlined_call_operand.hbm [shape: bf16[2,256,256], index: 6, kind: input, shape index: {}]
  %s7 = inlined_call_operand.hbm [shape: bf16[2,256,256], index: 7, kind: input, shape index: {}]
  %s8 = inlined_call_operand.hbm [shape: bf16[2,256,128], index: 8, kind: input, shape index: {}]
  %s9 = inlined_call_operand.vmem [shape: f32[1,256], index: 9, kind: input, shape index: {}]
  %s10 = inlined_call_operand.vmem [shape: f32[1,256], index: 10, kind: input, shape index: {}]
  %s11 = inlined_call_operand.vmem [shape: f32[1,256], index: 11, kind: input, shape index: {}]
  %s12 = inlined_call_operand.vmem [shape: f32[1,128], index: 12, kind: input, shape index: {}]
  %s13 = inlined_call_operand.hbm [shape: f32[32,128], index: 13, kind: output, shape index: {}]
  %s14 = sld [smem:[#allocation0]]
  $region121: #{tpu_custom_call.1} parent=0
    _
  %s16 = ssub.s32 1, %s14
  %s17 = scalar_select 0, %s16, %s14
  $region1: #{tpu_custom_call.1} parent=0
    #allocation2 [shape = 'u8[16384]{0}', space=vmem, size = 0x4000, scoped, tag = 'input window, operand 0']
    #allocation3 [shape = 's32[2]{0}', space=sflag, size = 0x8, scoped, tag = 'scoped memory for tpu_custom_call.1']
    #allocation4 [shape = 's32[2]{0}', space=sflag, size = 0x8, scoped, tag = 'scoped memory for tpu_custom_call.1']
    #allocation5 [shape = 'u8[16384]{0}', space=vmem, size = 0x4000, scoped, tag = 'input window, operand 1']
    #allocation6 [shape = 's32[2]{0}', space=sflag, size = 0x8, scoped, tag = 'scoped memory for tpu_custom_call.1']
    #allocation7 [shape = 'u8[32768]{0}', space=vmem, size = 0x8000, scoped, tag = 'input window, operand 2']
    #allocation8 [shape = 'u8[32768]{0}', space=vmem, size = 0x8000, scoped, tag = 'input window, operand 3']
    #allocation9 [shape = 's32[2]{0}', space=sflag, size = 0x8, scoped, tag = 'scoped memory for tpu_custom_call.1']
    #allocation10 [shape = 'u8[32768]{0}', space=vmem, size = 0x8000, scoped, tag = 'input window, operand 4']
    #allocation11 [shape = 'u8[131072]{0}', space=vmem, size = 0x20000, scoped, tag = 'input window, operand 5, single buffered']
    #allocation12 [shape = 's32[1]{0}', space=sflag, size = 0x4, scoped, tag = 'scoped memory for tpu_custom_call.1']
    #allocation13 [shape = 'u8[262144]{0}', space=vmem, size = 0x40000, scoped, tag = 'input window, operand 6, single buffered']
    #allocation14 [shape = 'u8[262144]{0}', space=vmem, size = 0x40000, scoped, tag = 'input window, operand 7, single buffered']
    #allocation15 [shape = 's32[1]{0}', space=sflag, size = 0x4, scoped, tag = 'scoped memory for tpu_custom_call.1']
    #allocation16 [shape = 'u8[131072]{0}', space=vmem, size = 0x20000, scoped, tag = 'input window, operand 8, single buffered']
    #allocation17 [shape = 'u8[16384]{0}', space=vmem, size = 0x4000, scoped, tag = 'output window, operand 0']
    %18 = vsyncpa [#allocation3], 0
    %s19 = scalar_lea.sflag [#allocation3], 1
    %20 = vsyncpa %s19, 0
    %21 = vsyncpa [#allocation6], 0
    %s22 = scalar_lea.sflag [#allocation6], 1
    %23 = vsyncpa %s22, 0
    %24 = vsyncpa [#allocation9], 0
    %s25 = scalar_lea.sflag [#allocation9], 1
    %26 = vsyncpa %s25, 0
    %27 = vsyncpa [#allocation12], 0
    %28 = vsyncpa [#allocation15], 0
    %29 = vsyncpa [#allocation4], 0
    %s30 = scalar_lea.sflag [#allocation4], 1
    %31 = vsyncpa %s30, 0
    loop: start=0, step=1, limit=4
    $region2: #{tpu_custom_call.1} parent=1 // loop_pre_header
      _
    $region3: #{tpu_custom_call.1} parent=1 // loop_header
      %s33 = sphi 0, %s37
      %p34 = scmp.ge.s32.totalorder %s33, 4
      %s43 = sphi 0, %s45
      %s46 = sphi 0, %s43
      %s47 = sphi 0, %s46
      %s63 = sphi 0, %s47
      %s69 = sphi 0, %s71
      %s72 = sphi 0, %s69
      %s73 = sphi 0, %s72
      %s89 = sphi 0, %s73
      %s95 = sphi 0, %s97
      %s98 = sphi 0, %s95
      %s99 = sphi 0, %s98
      %s115 = sphi 0, %s99
      %s121 = sphi 0, %s123
      %s124 = sphi 0, %s121
      %s125 = sphi 0, %s124
      %s141 = sphi 0, %s125
      %s147 = sphi 0, %s149
      %s150 = sphi 0, %s147
      %s151 = sphi 0, %s150
      %s167 = sphi 0, %s151
      %s171 = sphi 0, %s171
      %s173 = sphi 0, %s171
      %s174 = sphi 0, %s173
      %s188 = sphi 0, %s174
      %s192 = sphi 0, %s192
      %s194 = sphi 0, %s192
      %s195 = sphi 0, %s194
      %s209 = sphi 0, %s195
      %s213 = sphi 0, %s213
      %s215 = sphi 0, %s213
      %s216 = sphi 0, %s215
      %s230 = sphi 0, %s216
      %s234 = sphi 0, %s234
      %s236 = sphi 0, %s234
      %s237 = sphi 0, %s236
      %s251 = sphi 0, %s237
      %s255 = sphi 0, %s255
      %s257 = sphi 0, %s255
      %s258 = sphi 0, %s257
      %s272 = sphi 0, %s258
      %s276 = sphi 0, %s276
      %s278 = sphi 0, %s276
      %s279 = sphi 0, %s278
      %s293 = sphi 0, %s279
      %s297 = sphi 0, %s297
      %s299 = sphi 0, %s297
      %s300 = sphi 0, %s299
      %s314 = sphi 0, %s300
      %s318 = sphi 0, %s318
      %s320 = sphi 0, %s318
      %s321 = sphi 0, %s320
      %s335 = sphi 0, %s321
      %s341 = sphi 0, %s343
      %s344 = sphi 0, %s341
      %s345 = sphi 0, %s344
      %s361 = sphi 0, %s345
    $region4: #{tpu_custom_call.1} parent=1 // loop_header_branch
      %36 = sbr.rel (%p34) target = $region8
    $region5: #{tpu_custom_call.1} parent=1 // loop_body
      %s38 = ssub.s32 %s33, 1
      %s39 = ssub.s32 %s33, 2
      %s40 = sadd.s32 %s33, 1
      %s41 = ssub.s32 %s33, %s40
      %p42 = scmp.eq.s32.totalorder %s41, 0
      %s44 = sadd.s32 %s43, 1
      %s45 = scalar_select %p42, %s43, %s44
      %p48 = pneg %p42
      %p49 = scmp.eq.s32.totalorder %s33, 1
      %p50 = por %p48, %p49
      %p51 = scmp.ne.s32.totalorder %s43, %s46
      %p52 = scmp.eq.s32.totalorder %s33, 0
      %p53 = por %p51, %p52
      %p54 = scmp.ne.s32.totalorder %s43, %s46
      %p55 = scmp.eq.s32.totalorder %s38, 1
      %p56 = por %p54, %p55
      %p57 = scmp.ne.s32.totalorder %s46, %s47
      %p58 = scmp.eq.s32.totalorder %s38, 0
      %p59 = por %p57, %p58
      %p60 = scmp.ne.s32.totalorder %s46, %s47
      %p61 = scmp.eq.s32.totalorder %s39, 1
      %p62 = por %p60, %p61
      %p64 = scmp.ne.s32.totalorder %s47, %s63
      %p65 = scmp.eq.s32.totalorder %s39, 0
      %p66 = por %p64, %p65
      %s67 = ssub.s32 %s33, %s40
      %p68 = scmp.eq.s32.totalorder %s67, 0
      %s70 = sadd.s32 %s69, 1
      %s71 = scalar_select %p68, %s69, %s70
      %p74 = pneg %p68
      %p75 = scmp.eq.s32.totalorder %s33, 1
      %p76 = por %p74, %p75
      %p77 = scmp.ne.s32.totalorder %s69, %s72
      %p78 = scmp.eq.s32.totalorder %s33, 0
      %p79 = por %p77, %p78
      %p80 = scmp.ne.s32.totalorder %s69, %s72
      %p81 = scmp.eq.s32.totalorder %s38, 1
      %p82 = por %p80, %p81
      %p83 = scmp.ne.s32.totalorder %s72, %s73
      %p84 = scmp.eq.s32.totalorder %s38, 0
      %p85 = por %p83, %p84
      %p86 = scmp.ne.s32.totalorder %s72, %s73
      %p87 = scmp.eq.s32.totalorder %s39, 1
      %p88 = por %p86, %p87
      %p90 = scmp.ne.s32.totalorder %s73, %s89
      %p91 = scmp.eq.s32.totalorder %s39, 0
      %p92 = por %p90, %p91
      %s93 = ssub.s32 %s33, %s40
      %p94 = scmp.eq.s32.totalorder %s93, 0
      %s96 = sadd.s32 %s95, 1
      %s97 = scalar_select %p94, %s95, %s96
      %p100 = pneg %p94
      %p101 = scmp.eq.s32.totalorder %s33, 1
      %p102 = por %p100, %p101
      %p103 = scmp.ne.s32.totalorder %s95, %s98
      %p104 = scmp.eq.s32.totalorder %s33, 0
      %p105 = por %p103, %p104
      %p106 = scmp.ne.s32.totalorder %s95, %s98
      %p107 = scmp.eq.s32.totalorder %s38, 1
      %p108 = por %p106, %p107
      %p109 = scmp.ne.s32.totalorder %s98, %s99
      %p110 = scmp.eq.s32.totalorder %s38, 0
      %p111 = por %p109, %p110
      %p112 = scmp.ne.s32.totalorder %s98, %s99
      %p113 = scmp.eq.s32.totalorder %s39, 1
      %p114 = por %p112, %p113
      %p116 = scmp.ne.s32.totalorder %s99, %s115
      %p117 = scmp.eq.s32.totalorder %s39, 0
      %p118 = por %p116, %p117
      %s119 = ssub.s32 %s33, %s40
      %p120 = scmp.eq.s32.totalorder %s119, 0
      %s122 = sadd.s32 %s121, 1
      %s123 = scalar_select %p120, %s121, %s122
      %p126 = pneg %p120
      %p127 = scmp.eq.s32.totalorder %s33, 1
      %p128 = por %p126, %p127
      %p129 = scmp.ne.s32.totalorder %s121, %s124
      %p130 = scmp.eq.s32.totalorder %s33, 0
      %p131 = por %p129, %p130
      %p132 = scmp.ne.s32.totalorder %s121, %s124
      %p133 = scmp.eq.s32.totalorder %s38, 1
      %p134 = por %p132, %p133
      %p135 = scmp.ne.s32.totalorder %s124, %s125
      %p136 = scmp.eq.s32.totalorder %s38, 0
      %p137 = por %p135, %p136
      %p138 = scmp.ne.s32.totalorder %s124, %s125
      %p139 = scmp.eq.s32.totalorder %s39, 1
      %p140 = por %p138, %p139
      %p142 = scmp.ne.s32.totalorder %s125, %s141
      %p143 = scmp.eq.s32.totalorder %s39, 0
      %p144 = por %p142, %p143
      %s145 = ssub.s32 %s33, %s40
      %p146 = scmp.eq.s32.totalorder %s145, 0
      %s148 = sadd.s32 %s147, 1
      %s149 = scalar_select %p146, %s147, %s148
      %p152 = pneg %p146
      %p153 = scmp.eq.s32.totalorder %s33, 1
      %p154 = por %p152, %p153
      %p155 = scmp.ne.s32.totalorder %s147, %s150
      %p156 = scmp.eq.s32.totalorder %s33, 0
      %p157 = por %p155, %p156
      %p158 = scmp.ne.s32.totalorder %s147, %s150
      %p159 = scmp.eq.s32.totalorder %s38, 1
      %p160 = por %p158, %p159
      %p161 = scmp.ne.s32.totalorder %s150, %s151
      %p162 = scmp.eq.s32.totalorder %s38, 0
      %p163 = por %p161, %p162
      %p164 = scmp.ne.s32.totalorder %s150, %s151
      %p165 = scmp.eq.s32.totalorder %s39, 1
      %p166 = por %p164, %p165
      %p168 = scmp.ne.s32.totalorder %s151, %s167
      %p169 = scmp.eq.s32.totalorder %s39, 0
      %p170 = por %p168, %p169
      %s172 = sadd.s32 %s171, 1
      %p175 = scmp.eq.s32.totalorder %s33, 1
      %p176 = scmp.ne.s32.totalorder %s171, %s173
      %p177 = scmp.eq.s32.totalorder %s33, 0
      %p178 = por %p176, %p177
      %p179 = scmp.ne.s32.totalorder %s171, %s173
      %p180 = scmp.eq.s32.totalorder %s38, 1
      %p181 = por %p179, %p180
      %p182 = scmp.ne.s32.totalorder %s173, %s174
      %p183 = scmp.eq.s32.totalorder %s38, 0
      %p184 = por %p182, %p183
      %p185 = scmp.ne.s32.totalorder %s173, %s174
      %p186 = scmp.eq.s32.totalorder %s39, 1
      %p187 = por %p185, %p186
      %p189 = scmp.ne.s32.totalorder %s174, %s188
      %p190 = scmp.eq.s32.totalorder %s39, 0
      %p191 = por %p189, %p190
      %s193 = sadd.s32 %s192, 1
      %p196 = scmp.eq.s32.totalorder %s33, 1
      %p197 = scmp.ne.s32.totalorder %s192, %s194
      %p198 = scmp.eq.s32.totalorder %s33, 0
      %p199 = por %p197, %p198
      %p200 = scmp.ne.s32.totalorder %s192, %s194
      %p201 = scmp.eq.s32.totalorder %s38, 1
      %p202 = por %p200, %p201
      %p203 = scmp.ne.s32.totalorder %s194, %s195
      %p204 = scmp.eq.s32.totalorder %s38, 0
      %p205 = por %p203, %p204
      %p206 = scmp.ne.s32.totalorder %s194, %s195
      %p207 = scmp.eq.s32.totalorder %s39, 1
      %p208 = por %p206, %p207
      %p210 = scmp.ne.s32.totalorder %s195, %s209
      %p211 = scmp.eq.s32.totalorder %s39, 0
      %p212 = por %p210, %p211
      %s214 = sadd.s32 %s213, 1
      %p217 = scmp.eq.s32.totalorder %s33, 1
      %p218 = scmp.ne.s32.totalorder %s213, %s215
      %p219 = scmp.eq.s32.totalorder %s33, 0
      %p220 = por %p218, %p219
      %p221 = scmp.ne.s32.totalorder %s213, %s215
      %p222 = scmp.eq.s32.totalorder %s38, 1
      %p223 = por %p221, %p222
      %p224 = scmp.ne.s32.totalorder %s215, %s216
      %p225 = scmp.eq.s32.totalorder %s38, 0
      %p226 = por %p224, %p225
      %p227 = scmp.ne.s32.totalorder %s215, %s216
      %p228 = scmp.eq.s32.totalorder %s39, 1
      %p229 = por %p227, %p228
      %p231 = scmp.ne.s32.totalorder %s216, %s230
      %p232 = scmp.eq.s32.totalorder %s39, 0
      %p233 = por %p231, %p232
      %s235 = sadd.s32 %s234, 1
      %p238 = scmp.eq.s32.totalorder %s33, 1
      %p239 = scmp.ne.s32.totalorder %s234, %s236
      %p240 = scmp.eq.s32.totalorder %s33, 0
      %p241 = por %p239, %p240
      %p242 = scmp.ne.s32.totalorder %s234, %s236
      %p243 = scmp.eq.s32.totalorder %s38, 1
      %p244 = por %p242, %p243
      %p245 = scmp.ne.s32.totalorder %s236, %s237
      %p246 = scmp.eq.s32.totalorder %s38, 0
      %p247 = por %p245, %p246
      %p248 = scmp.ne.s32.totalorder %s236, %s237
      %p249 = scmp.eq.s32.totalorder %s39, 1
      %p250 = por %p248, %p249
      %p252 = scmp.ne.s32.totalorder %s237, %s251
      %p253 = scmp.eq.s32.totalorder %s39, 0
      %p254 = por %p252, %p253
      %s256 = sadd.s32 %s255, 1
      %p259 = scmp.eq.s32.totalorder %s33, 1
      %p260 = scmp.ne.s32.totalorder %s255, %s257
      %p261 = scmp.eq.s32.totalorder %s33, 0
      %p262 = por %p260, %p261
      %p263 = scmp.ne.s32.totalorder %s255, %s257
      %p264 = scmp.eq.s32.totalorder %s38, 1
      %p265 = por %p263, %p264
      %p266 = scmp.ne.s32.totalorder %s257, %s258
      %p267 = scmp.eq.s32.totalorder %s38, 0
      %p268 = por %p266, %p267
      %p269 = scmp.ne.s32.totalorder %s257, %s258
      %p270 = scmp.eq.s32.totalorder %s39, 1
      %p271 = por %p269, %p270
      %p273 = scmp.ne.s32.totalorder %s258, %s272
      %p274 = scmp.eq.s32.totalorder %s39, 0
      %p275 = por %p273, %p274
      %s277 = sadd.s32 %s276, 1
      %p280 = scmp.eq.s32.totalorder %s33, 1
      %p281 = scmp.ne.s32.totalorder %s276, %s278
      %p282 = scmp.eq.s32.totalorder %s33, 0
      %p283 = por %p281, %p282
      %p284 = scmp.ne.s32.totalorder %s276, %s278
      %p285 = scmp.eq.s32.totalorder %s38, 1
      %p286 = por %p284, %p285
      %p287 = scmp.ne.s32.totalorder %s278, %s279
      %p288 = scmp.eq.s32.totalorder %s38, 0
      %p289 = por %p287, %p288
      %p290 = scmp.ne.s32.totalorder %s278, %s279
      %p291 = scmp.eq.s32.totalorder %s39, 1
      %p292 = por %p290, %p291
      %p294 = scmp.ne.s32.totalorder %s279, %s293
      %p295 = scmp.eq.s32.totalorder %s39, 0
      %p296 = por %p294, %p295
      %s298 = sadd.s32 %s297, 1
      %p301 = scmp.eq.s32.totalorder %s33, 1
      %p302 = scmp.ne.s32.totalorder %s297, %s299
      %p303 = scmp.eq.s32.totalorder %s33, 0
      %p304 = por %p302, %p303
      %p305 = scmp.ne.s32.totalorder %s297, %s299
      %p306 = scmp.eq.s32.totalorder %s38, 1
      %p307 = por %p305, %p306
      %p308 = scmp.ne.s32.totalorder %s299, %s300
      %p309 = scmp.eq.s32.totalorder %s38, 0
      %p310 = por %p308, %p309
      %p311 = scmp.ne.s32.totalorder %s299, %s300
      %p312 = scmp.eq.s32.totalorder %s39, 1
      %p313 = por %p311, %p312
      %p315 = scmp.ne.s32.totalorder %s300, %s314
      %p316 = scmp.eq.s32.totalorder %s39, 0
      %p317 = por %p315, %p316
      %s319 = sadd.s32 %s318, 1
      %p322 = scmp.eq.s32.totalorder %s33, 1
      %p323 = scmp.ne.s32.totalorder %s318, %s320
      %p324 = scmp.eq.s32.totalorder %s33, 0
      %p325 = por %p323, %p324
      %p326 = scmp.ne.s32.totalorder %s318, %s320
      %p327 = scmp.eq.s32.totalorder %s38, 1
      %p328 = por %p326, %p327
      %p329 = scmp.ne.s32.totalorder %s320, %s321
      %p330 = scmp.eq.s32.totalorder %s38, 0
      %p331 = por %p329, %p330
      %p332 = scmp.ne.s32.totalorder %s320, %s321
      %p333 = scmp.eq.s32.totalorder %s39, 1
      %p334 = por %p332, %p333
      %p336 = scmp.ne.s32.totalorder %s321, %s335
      %p337 = scmp.eq.s32.totalorder %s39, 0
      %p338 = por %p336, %p337
      %s339 = ssub.s32 %s33, %s40
      %p340 = scmp.eq.s32.totalorder %s339, 0
      %s342 = sadd.s32 %s341, 1
      %s343 = scalar_select %p340, %s341, %s342
      %p346 = pneg %p340
      %p347 = scmp.eq.s32.totalorder %s33, 1
      %p348 = por %p346, %p347
      %p349 = scmp.ne.s32.totalorder %s341, %s344
      %p350 = scmp.eq.s32.totalorder %s33, 0
      %p351 = por %p349, %p350
      %p352 = scmp.ne.s32.totalorder %s341, %s344
      %p353 = scmp.eq.s32.totalorder %s38, 1
      %p354 = por %p352, %p353
      %p355 = scmp.ne.s32.totalorder %s344, %s345
      %p356 = scmp.eq.s32.totalorder %s38, 0
      %p357 = por %p355, %p356
      %p358 = scmp.ne.s32.totalorder %s344, %s345
      %p359 = scmp.eq.s32.totalorder %s39, 1
      %p360 = por %p358, %p359
      %p362 = scmp.ne.s32.totalorder %s345, %s361
      %p363 = scmp.eq.s32.totalorder %s39, 0
      %p364 = por %p362, %p363
      %p365 = scmp.le.s32.totalorder 1, %s33
      %p366 = scmp.lt.s32.totalorder %s33, 3
      %p367 = pnand %p365, %p366
      %p368 = pneg %p367
      // Predicated region
      $region9: #{tpu_custom_call.1} parent=5 // pred_check
        _
      $region10: #{tpu_custom_call.1} parent=5 // pred_check_branch
        %370 = sbr.rel (%p367) target = $region12
      $region11: #{tpu_custom_call.1} parent=5 // pred_region
        %s371 = ssub.s32 %s33, 1
        // Predicated region
        $region13: #{tpu_custom_call.1} parent=11 // pred_check
          %p372 = pneg %p184
        $region14: #{tpu_custom_call.1} parent=11 // pred_check_branch
          %374 = sbr.rel (%p372) target = $region16
        $region15: #{tpu_custom_call.1} parent=11 // pred_region
          %376 = vsyncadd [#allocation12], 0
          %s377 = sshll.u32 %s5, 4
          %s378 = int_to_ptr.hbm [resolvable:$true] %s377
          %s379 = sshll.u32 [#allocation11], 4
          %s380 = int_to_ptr.vmem [resolvable:$true] %s379
          %385 = dma.hbm_to_vmem [thread:$0]  %s378, 4096, %s380, [#allocation12], 128, 128, 8
        $region16: #{tpu_custom_call.1} parent=11 // pred_fallthru
          _
        // Predicated region
        $region17: #{tpu_custom_call.1} parent=11 // pred_check
          %p386 = pneg %p205
        $region18: #{tpu_custom_call.1} parent=11 // pred_check_branch
          %388 = sbr.rel (%p386) target = $region20
        $region19: #{tpu_custom_call.1} parent=11 // pred_region
          %390 = vsyncadd [#allocation12], 0
          %s391 = sshll.u32 %s6, 4
          %s392 = int_to_ptr.hbm [resolvable:$true] %s391
          %s393 = sshll.u32 [#allocation13], 4
          %s394 = int_to_ptr.vmem [resolvable:$true] %s393
          %399 = dma.hbm_to_vmem [thread:$0]  %s392, 8192, %s394, [#allocation12], 128, 128, 8
        $region20: #{tpu_custom_call.1} parent=11 // pred_fallthru
          _
        // Predicated region
        $region21: #{tpu_custom_call.1} parent=11 // pred_check
          %p400 = pneg %p226
        $region22: #{tpu_custom_call.1} parent=11 // pred_check_branch
          %402 = sbr.rel (%p400) target = $region24
        $region23: #{tpu_custom_call.1} parent=11 // pred_region
          %404 = vsyncadd [#allocation15], 0
          %s405 = sshll.u32 %s7, 4
          %s406 = int_to_ptr.hbm [resolvable:$true] %s405
          %s407 = sshll.u32 [#allocation14], 4
          %s408 = int_to_ptr.vmem [resolvable:$true] %s407
          %413 = dma.hbm_to_vmem [thread:$0]  %s406, 8192, %s408, [#allocation15], 128, 128, 8
        $region24: #{tpu_custom_call.1} parent=11 // pred_fallthru
          _
        // Predicated region
        $region25: #{tpu_custom_call.1} parent=11 // pred_check
          %p414 = pneg %p247
        $region26: #{tpu_custom_call.1} parent=11 // pred_check_branch
          %416 = sbr.rel (%p414) target = $region28
        $region27: #{tpu_custom_call.1} parent=11 // pred_region
          %418 = vsyncadd [#allocation15], 0
          %s419 = sshll.u32 %s8, 4
          %s420 = int_to_ptr.hbm [resolvable:$true] %s419
          %s421 = sshll.u32 [#allocation16], 4
          %s422 = int_to_ptr.vmem [resolvable:$true] %s421
          %427 = dma.hbm_to_vmem [thread:$0]  %s420, 4096, %s422, [#allocation15], 64, 64, 4
        $region28: #{tpu_custom_call.1} parent=11 // pred_fallthru
          _
        // Predicated region
        $region29: #{tpu_custom_call.1} parent=11 // pred_check
          %p428 = pneg %p268
        $region30: #{tpu_custom_call.1} parent=11 // pred_check_branch
          %430 = sbr.rel (%p428) target = $region32
        $region31: #{tpu_custom_call.1} parent=11 // pred_region
          _
        $region32: #{tpu_custom_call.1} parent=11 // pred_fallthru
          _
        // Predicated region
        $region33: #{tpu_custom_call.1} parent=11 // pred_check
          %p431 = pneg %p289
        $region34: #{tpu_custom_call.1} parent=11 // pred_check_branch
          %433 = sbr.rel (%p431) target = $region36
        $region35: #{tpu_custom_call.1} parent=11 // pred_region
          _
        $region36: #{tpu_custom_call.1} parent=11 // pred_fallthru
          _
        // Predicated region
        $region37: #{tpu_custom_call.1} parent=11 // pred_check
          %p434 = pneg %p310
        $region38: #{tpu_custom_call.1} parent=11 // pred_check_branch
          %436 = sbr.rel (%p434) target = $region40
        $region39: #{tpu_custom_call.1} parent=11 // pred_region
          _
        $region40: #{tpu_custom_call.1} parent=11 // pred_fallthru
          _
        // Predicated region
        $region41: #{tpu_custom_call.1} parent=11 // pred_check
          %p437 = pneg %p331
        $region42: #{tpu_custom_call.1} parent=11 // pred_check_branch
          %439 = sbr.rel (%p437) target = $region44
        $region43: #{tpu_custom_call.1} parent=11 // pred_region
          _
        $region44: #{tpu_custom_call.1} parent=11 // pred_fallthru
          _
      $region12: #{tpu_custom_call.1} parent=5 // pred_fallthru
        _
      %p440 = scmp.lt.s32.totalorder %s33, 2
      // Predicated region
      $region45: #{tpu_custom_call.1} parent=5 // pred_check
        %p441 = pneg %p440
      $region46: #{tpu_custom_call.1} parent=5 // pred_check_branch
        %443 = sbr.rel (%p441) target = $region48
      $region47: #{tpu_custom_call.1} parent=5 // pred_region
        // Predicated region
        $region49: #{tpu_custom_call.1} parent=47 // pred_check
          %p444 = pneg %p53
        $region50: #{tpu_custom_call.1} parent=47 // pred_check_branch
          %446 = sbr.rel (%p444) target = $region52
        $region51: #{tpu_custom_call.1} parent=47 // pred_region
          %s447 = sand.u32 %s43, 1
          %s448 = scalar_lea.sflag [#allocation3], %s447
          %s449 = sand.u32 %s43, 1
          %s450 = smul.addr %s449, 16
          %s451 = scalar_lea.vmem [#allocation2], %s450
          %s452 = smul.u32 2, %s33
          %454 = vsyncadd %s448, 0
          %s455 = smul.addr %s452, 8
          %s456 = scalar_lea.hbm %s0, %s455
          %s457 = sshll.u32 %s456, 4
          %s458 = int_to_ptr.hbm [resolvable:$true] %s457
          %s459 = sshll.u32 %s451, 4
          %s460 = int_to_ptr.vmem [resolvable:$true] %s459
          %465 = dma.hbm_to_vmem [thread:$0]  %s458, 256, %s460, %s448, 128, 128, 8
        $region52: #{tpu_custom_call.1} parent=47 // pred_fallthru
          _
        // Predicated region
        $region53: #{tpu_custom_call.1} parent=47 // pred_check
          %p466 = pneg %p79
        $region54: #{tpu_custom_call.1} parent=47 // pred_check_branch
          %468 = sbr.rel (%p466) target = $region56
        $region55: #{tpu_custom_call.1} parent=47 // pred_region
          %s469 = sand.u32 %s33, 1
          %s470 = scalar_lea.sflag [#allocation6], %s469
          %s471 = sand.u32 %s69, 1
          %s472 = smul.addr %s471, 16
          %s473 = scalar_lea.vmem [#allocation5], %s472
          %s474 = smul.u32 2, %s33
          %476 = vsyncadd %s470, 0
          %s477 = smul.addr %s474, 8
          %s478 = scalar_lea.hbm %s1, %s477
          %s479 = sshll.u32 %s478, 4
          %s480 = int_to_ptr.hbm [resolvable:$true] %s479
          %s481 = sshll.u32 %s473, 4
          %s482 = int_to_ptr.vmem [resolvable:$true] %s481
          %487 = dma.hbm_to_vmem [thread:$0]  %s480, 256, %s482, %s470, 128, 128, 8
        $region56: #{tpu_custom_call.1} parent=47 // pred_fallthru
          _
        // Predicated region
        $region57: #{tpu_custom_call.1} parent=47 // pred_check
          %p488 = pneg %p105
        $region58: #{tpu_custom_call.1} parent=47 // pred_check_branch
          %490 = sbr.rel (%p488) target = $region60
        $region59: #{tpu_custom_call.1} parent=47 // pred_region
          %s491 = sand.u32 %s33, 1
          %s492 = scalar_lea.sflag [#allocation6], %s491
          %s493 = sand.u32 %s95, 1
          %s494 = smul.addr %s493, 32
          %s495 = scalar_lea.vmem [#allocation7], %s494
          %s496 = smul.u32 2, %s33
          %498 = vsyncadd %s492, 0
          %s499 = smul.addr %s496, 2
          %s500 = smul.addr %s499, 8
          %s501 = scalar_lea.hbm %s2, %s500
          %s502 = sshll.u32 %s501, 4
          %s503 = int_to_ptr.hbm [resolvable:$true] %s502
          %s504 = sshll.u32 %s495, 4
          %s505 = int_to_ptr.vmem [resolvable:$true] %s504
          %510 = dma.hbm_to_vmem [thread:$0]  %s503, 512, %s505, %s492, 256, 256, 16
        $region60: #{tpu_custom_call.1} parent=47 // pred_fallthru
          _
        // Predicated region
        $region61: #{tpu_custom_call.1} parent=47 // pred_check
          %p511 = pneg %p131
        $region62: #{tpu_custom_call.1} parent=47 // pred_check_branch
          %513 = sbr.rel (%p511) target = $region64
        $region63: #{tpu_custom_call.1} parent=47 // pred_region
          %s514 = sand.u32 %s33, 1
          %s515 = scalar_lea.sflag [#allocation9], %s514
          %s516 = sand.u32 %s121, 1
          %s517 = smul.addr %s516, 32
          %s518 = scalar_lea.vmem [#allocation8], %s517
          %s519 = smul.u32 2, %s33
          %521 = vsyncadd %s515, 0
          %s522 = smul.addr %s519, 2
          %s523 = smul.addr %s522, 8
          %s524 = scalar_lea.hbm %s3, %s523
          %s525 = sshll.u32 %s524, 4
          %s526 = int_to_ptr.hbm [resolvable:$true] %s525
          %s527 = sshll.u32 %s518, 4
          %s528 = int_to_ptr.vmem [resolvable:$true] %s527
          %533 = dma.hbm_to_vmem [thread:$0]  %s526, 512, %s528, %s515, 256, 256, 16
        $region64: #{tpu_custom_call.1} parent=47 // pred_fallthru
          _
        // Predicated region
        $region65: #{tpu_custom_call.1} parent=47 // pred_check
          %p534 = pneg %p157
        $region66: #{tpu_custom_call.1} parent=47 // pred_check_branch
          %536 = sbr.rel (%p534) target = $region68
        $region67: #{tpu_custom_call.1} parent=47 // pred_region
          %s537 = sand.u32 %s33, 1
          %s538 = scalar_lea.sflag [#allocation9], %s537
          %s539 = sand.u32 %s147, 1
          %s540 = smul.addr %s539, 32
          %s541 = scalar_lea.vmem [#allocation10], %s540
          %s542 = smul.u32 2, %s33
          %544 = vsyncadd %s538, 0
          %s545 = smul.addr %s542, 2
          %s546 = smul.addr %s545, 8
          %s547 = scalar_lea.hbm %s4, %s546
          %s548 = sshll.u32 %s547, 4
          %s549 = int_to_ptr.hbm [resolvable:$true] %s548
          %s550 = sshll.u32 %s541, 4
          %s551 = int_to_ptr.vmem [resolvable:$true] %s550
          %556 = dma.hbm_to_vmem [thread:$0]  %s549, 512, %s551, %s538, 256, 256, 16
        $region68: #{tpu_custom_call.1} parent=47 // pred_fallthru
          _
      $region48: #{tpu_custom_call.1} parent=5 // pred_fallthru
        _
      %p557 = scmp.le.s32.totalorder 1, %s33
      %p558 = scmp.lt.s32.totalorder %s33, 3
      %p559 = pnand %p557, %p558
      %p560 = pneg %p559
      // Predicated region
      $region69: #{tpu_custom_call.1} parent=5 // pred_check
        _
      $region70: #{tpu_custom_call.1} parent=5 // pred_check_branch
        %562 = sbr.rel (%p559) target = $region72
      $region71: #{tpu_custom_call.1} parent=5 // pred_region
        %s563 = ssub.s32 %s33, 1
        %s564 = sand.u32 %s46, 1
        %s565 = scalar_lea.sflag [#allocation3], %s564
        %s566 = sand.u32 %s46, 1
        %s567 = smul.addr %s566, 16
        %s568 = scalar_lea.vmem [#allocation2], %s567
        // Predicated region
        $region73: #{tpu_custom_call.1} parent=71 // pred_check
          %p569 = pneg %p59
        $region74: #{tpu_custom_call.1} parent=71 // pred_check_branch
          %571 = sbr.rel (%p569) target = $region76
        $region75: #{tpu_custom_call.1} parent=71 // pred_region
          %573 = dma.done %s565, 256
        $region76: #{tpu_custom_call.1} parent=71 // pred_fallthru
          _
        %s574 = sand.u32 %s38, 1
        %s575 = scalar_lea.sflag [#allocation6], %s574
        %s576 = sand.u32 %s72, 1
        %s577 = smul.addr %s576, 16
        %s578 = scalar_lea.vmem [#allocation5], %s577
        // Predicated region
        $region77: #{tpu_custom_call.1} parent=71 // pred_check
          %p579 = pneg %p85
        $region78: #{tpu_custom_call.1} parent=71 // pred_check_branch
          %581 = sbr.rel (%p579) target = $region80
        $region79: #{tpu_custom_call.1} parent=71 // pred_region
          %583 = dma.done %s575, 256
        $region80: #{tpu_custom_call.1} parent=71 // pred_fallthru
          _
        %s584 = sand.u32 %s38, 1
        %s585 = scalar_lea.sflag [#allocation6], %s584
        %s586 = sand.u32 %s98, 1
        %s587 = smul.addr %s586, 32
        %s588 = scalar_lea.vmem [#allocation7], %s587
        // Predicated region
        $region81: #{tpu_custom_call.1} parent=71 // pred_check
          %p589 = pneg %p111
        $region82: #{tpu_custom_call.1} parent=71 // pred_check_branch
          %591 = sbr.rel (%p589) target = $region84
        $region83: #{tpu_custom_call.1} parent=71 // pred_region
          %593 = dma.done %s585, 512
        $region84: #{tpu_custom_call.1} parent=71 // pred_fallthru
          _
        %s594 = sand.u32 %s38, 1
        %s595 = scalar_lea.sflag [#allocation9], %s594
        %s596 = sand.u32 %s124, 1
        %s597 = smul.addr %s596, 32
        %s598 = scalar_lea.vmem [#allocation8], %s597
        // Predicated region
        $region85: #{tpu_custom_call.1} parent=71 // pred_check
          %p599 = pneg %p137
        $region86: #{tpu_custom_call.1} parent=71 // pred_check_branch
          %601 = sbr.rel (%p599) target = $region88
        $region87: #{tpu_custom_call.1} parent=71 // pred_region
          %603 = dma.done %s595, 512
        $region88: #{tpu_custom_call.1} parent=71 // pred_fallthru
          _
        %s604 = sand.u32 %s38, 1
        %s605 = scalar_lea.sflag [#allocation9], %s604
        %s606 = sand.u32 %s150, 1
        %s607 = smul.addr %s606, 32
        %s608 = scalar_lea.vmem [#allocation10], %s607
        // Predicated region
        $region89: #{tpu_custom_call.1} parent=71 // pred_check
          %p609 = pneg %p163
        $region90: #{tpu_custom_call.1} parent=71 // pred_check_branch
          %611 = sbr.rel (%p609) target = $region92
        $region91: #{tpu_custom_call.1} parent=71 // pred_region
          %613 = dma.done %s605, 512
        $region92: #{tpu_custom_call.1} parent=71 // pred_fallthru
          _
        // Predicated region
        $region93: #{tpu_custom_call.1} parent=71 // pred_check
          %p614 = pneg %p184
        $region94: #{tpu_custom_call.1} parent=71 // pred_check_branch
          %616 = sbr.rel (%p614) target = $region96
        $region95: #{tpu_custom_call.1} parent=71 // pred_region
          %618 = dma.done [#allocation12], 4096
        $region96: #{tpu_custom_call.1} parent=71 // pred_fallthru
          _
        // Predicated region
        $region97: #{tpu_custom_call.1} parent=71 // pred_check
          %p619 = pneg %p205
        $region98: #{tpu_custom_call.1} parent=71 // pred_check_branch
          %621 = sbr.rel (%p619) target = $region100
        $region99: #{tpu_custom_call.1} parent=71 // pred_region
          %623 = dma.done [#allocation12], 8192
        $region100: #{tpu_custom_call.1} parent=71 // pred_fallthru
          _
        // Predicated region
        $region101: #{tpu_custom_call.1} parent=71 // pred_check
          %p624 = pneg %p226
        $region102: #{tpu_custom_call.1} parent=71 // pred_check_branch
          %626 = sbr.rel (%p624) target = $region104
        $region103: #{tpu_custom_call.1} parent=71 // pred_region
          %628 = dma.done [#allocation15], 8192
        $region104: #{tpu_custom_call.1} parent=71 // pred_fallthru
          _
        // Predicated region
        $region105: #{tpu_custom_call.1} parent=71 // pred_check
          %p629 = pneg %p247
        $region106: #{tpu_custom_call.1} parent=71 // pred_check_branch
          %631 = sbr.rel (%p629) target = $region108
        $region107: #{tpu_custom_call.1} parent=71 // pred_region
          %633 = dma.done [#allocation15], 4096
        $region108: #{tpu_custom_call.1} parent=71 // pred_fallthru
          _
        %s634 = sand.u32 %s46, 1
        %s635 = scalar_lea.sflag [#allocation3], %s634
        %s636 = sand.u32 %s46, 1
        %s637 = smul.addr %s636, 16
        %s638 = scalar_lea.vmem [#allocation2], %s637
        %p639 = pneg %p59
        %p640 = pneg %p56
        %s641 = sand.u32 %s38, 1
        %s642 = scalar_lea.sflag [#allocation6], %s641
        %s643 = sand.u32 %s72, 1
        %s644 = smul.addr %s643, 16
        %s645 = scalar_lea.vmem [#allocation5], %s644
        %p646 = pneg %p85
        %p647 = pneg %p82
        %s648 = sand.u32 %s38, 1
        %s649 = scalar_lea.sflag [#allocation6], %s648
        %s650 = sand.u32 %s98, 1
        %s651 = smul.addr %s650, 32
        %s652 = scalar_lea.vmem [#allocation7], %s651
        %p653 = pneg %p111
        %p654 = pneg %p108
        %s655 = sand.u32 %s38, 1
        %s656 = scalar_lea.sflag [#allocation9], %s655
        %s657 = sand.u32 %s124, 1
        %s658 = smul.addr %s657, 32
        %s659 = scalar_lea.vmem [#allocation8], %s658
        %p660 = pneg %p137
        %p661 = pneg %p134
        %s662 = sand.u32 %s38, 1
        %s663 = scalar_lea.sflag [#allocation9], %s662
        %s664 = sand.u32 %s150, 1
        %s665 = smul.addr %s664, 32
        %s666 = scalar_lea.vmem [#allocation10], %s665
        %p667 = pneg %p163
        %p668 = pneg %p160
        %p669 = pneg %p184
        %p670 = pneg %p181
        %p671 = pneg %p205
        %p672 = pneg %p202
        %p673 = pneg %p226
        %p674 = pneg %p223
        %p675 = pneg %p247
        %p676 = pneg %p244
        %p677 = pneg %p268
        %p678 = pneg %p265
        %p679 = pneg %p289
        %p680 = pneg %p286
        %p681 = pneg %p310
        %p682 = pneg %p307
        %p683 = pneg %p331
        %p684 = pneg %p328
        %p685 = pneg %p357
        %p686 = pneg %p354
        %s687 = sand.u32 %s344, 1
        %s688 = scalar_lea.sflag [#allocation4], %s687
        %s689 = sand.u32 %s344, 1
        %s690 = smul.addr %s689, 16
        %s691 = scalar_lea.vmem [#allocation17], %s690
        %s692 = smul.u32 2, %s38
        %s693 = smul.u32 2, %s38
        %s694 = smul.u32 2, %s38
        %s695 = smul.u32 2, %s38
        %s696 = smul.u32 2, %s38
        %s697 = smul.u32 2, %s38
        %v699 = vlaneseq
        %v700 = vshrl.u32 %v699, 7
        %v701 = vadd.s32 %v700, 8
        %v702 = vlaneseq
        %v703 = vand.u32 %v702, 127
        %v704 = vadd.s32 %v703, 1
        %vm705 = vcmp.eq.s32.totalorder %v700, %v704
        %vm706 = vcmp.eq.s32.totalorder %v701, %v704
        %v707 = vsel %vm705, 1.0, 0.0
        %v708 = vsel %vm706, 1.0, 0.0
        %v709 = vpack.c.bf16 %v708, %v707
        %v710 = vld [vmem:[%s568] sm:$0xff]
        %v711 = vld [vmem:[%s568 + $0x8] sm:$0xff]
        %v712 = vld [vmem:[%s578] sm:$0xff]
        %v713 = vld [vmem:[%s578 + $0x8] sm:$0xff]
        %v714 = vadd.f32 %v710, %v712
        %v715 = vadd.f32 %v711, %v713
        %v716 = vpack.c.bf16 %v715, %v714
        %vm717 = vcmask 130048
        %v719 = vsel %vm717, %v709, 0
        %721 = vmatpush.bf16.msra.mxu0 0
        %722 = vmatpush.bf16.msra.mxu0 0
        %723 = vmatpush.bf16.msra.mxu0 0
        %724 = vmatpush.bf16.msra.mxu0 0
        %725 = vmatpush.bf16.msra.mxu0 0
        %726 = vmatpush.bf16.msra.mxu0 0
        %727 = vmatpush.bf16.msra.mxu0 0
        %728 = vmatpush.bf16.msra.mxu0 %v716
        %729 = vmatmul.bf16.gmra.mxu0 %v719
        %v730 = vpop.f32.mrf.mxu0
        %v731 = vadd.f32 0.0, %v730
        %v732 = vpop.f32.mrf.mxu0
        %v733 = vadd.f32 0.0, %v732
        %734 = vdwg.mxu0
        %v735 = vpack.c.bf16 %v733, %v731
        %v736 = vld [vmem:[#allocation11] sm:$0xff]
        %v737 = vld [vmem:[#allocation11 + $0x8] sm:$0xff]
        %v738 = vld [vmem:[#allocation11 + $0x10] sm:$0xff]
        %v739 = vld [vmem:[#allocation11 + $0x18] sm:$0xff]
        %v740 = vld [vmem:[#allocation11 + $0x20] sm:$0xff]
        %v741 = vld [vmem:[#allocation11 + $0x28] sm:$0xff]
        %v742 = vld [vmem:[#allocation11 + $0x30] sm:$0xff]
        %v743 = vld [vmem:[#allocation11 + $0x38] sm:$0xff]
        %v744 = vld [vmem:[#allocation11 + $0x40] sm:$0xff]
        %v745 = vld [vmem:[#allocation11 + $0x48] sm:$0xff]
        %v746 = vld [vmem:[#allocation11 + $0x50] sm:$0xff]
        %v747 = vld [vmem:[#allocation11 + $0x58] sm:$0xff]
        %v748 = vld [vmem:[#allocation11 + $0x60] sm:$0xff]
        %v749 = vld [vmem:[#allocation11 + $0x68] sm:$0xff]
        %v750 = vld [vmem:[#allocation11 + $0x70] sm:$0xff]
        %v751 = vld [vmem:[#allocation11 + $0x78] sm:$0xff]
        %s752 = scalar_lea.vmem [#allocation11], 128
        %v753 = vld [vmem:[%s752] sm:$0xff]
        %v754 = vld [vmem:[%s752 + $0x8] sm:$0xff]
        %v755 = vld [vmem:[%s752 + $0x10] sm:$0xff]
        %v756 = vld [vmem:[%s752 + $0x18] sm:$0xff]
        %v757 = vld [vmem:[%s752 + $0x20] sm:$0xff]
        %v758 = vld [vmem:[%s752 + $0x28] sm:$0xff]
        %v759 = vld [vmem:[%s752 + $0x30] sm:$0xff]
        %v760 = vld [vmem:[%s752 + $0x38] sm:$0xff]
        %v761 = vld [vmem:[%s752 + $0x40] sm:$0xff]
        %v762 = vld [vmem:[%s752 + $0x48] sm:$0xff]
        %v763 = vld [vmem:[%s752 + $0x50] sm:$0xff]
        %v764 = vld [vmem:[%s752 + $0x58] sm:$0xff]
        %v765 = vld [vmem:[%s752 + $0x60] sm:$0xff]
        %v766 = vld [vmem:[%s752 + $0x68] sm:$0xff]
        %v767 = vld [vmem:[%s752 + $0x70] sm:$0xff]
        %v768 = vld [vmem:[%s752 + $0x78] sm:$0xff]
        %v785 = vunpack.c.l.b16 %v753
        %v786 = vunpack.c.h.b16 %v753
        %v787 = vunpack.c.l.b16 %v754
        %v788 = vunpack.c.h.b16 %v754
        %v789 = vunpack.c.l.b16 %v755
        %v790 = vunpack.c.h.b16 %v755
        %v791 = vunpack.c.l.b16 %v756
        %v792 = vunpack.c.h.b16 %v756
        %v793 = vunpack.c.l.b16 %v757
        %v794 = vunpack.c.h.b16 %v757
        %v795 = vunpack.c.l.b16 %v758
        %v796 = vunpack.c.h.b16 %v758
        %v797 = vunpack.c.l.b16 %v759
        %v798 = vunpack.c.h.b16 %v759
        %v799 = vunpack.c.l.b16 %v760
        %v800 = vunpack.c.h.b16 %v760
        %v801 = vunpack.c.l.b16 %v761
        %v802 = vunpack.c.h.b16 %v761
        %v803 = vunpack.c.l.b16 %v762
        %v804 = vunpack.c.h.b16 %v762
        %v805 = vunpack.c.l.b16 %v763
        %v806 = vunpack.c.h.b16 %v763
        %v807 = vunpack.c.l.b16 %v764
        %v808 = vunpack.c.h.b16 %v764
        %v809 = vunpack.c.l.b16 %v765
        %v810 = vunpack.c.h.b16 %v765
        %v811 = vunpack.c.l.b16 %v766
        %v812 = vunpack.c.h.b16 %v766
        %v813 = vunpack.c.l.b16 %v767
        %v814 = vunpack.c.h.b16 %v767
        %v815 = vunpack.c.l.b16 %v768
        %v816 = vunpack.c.h.b16 %v768
        %v817 = vpack.c.b16 %v787, %v785
        %v818 = vpack.c.b16 %v788, %v786
        %v819 = vpack.c.b16 %v791, %v789
        %v820 = vpack.c.b16 %v792, %v790
        %v821 = vpack.c.b16 %v795, %v793
        %v822 = vpack.c.b16 %v796, %v794
        %v823 = vpack.c.b16 %v799, %v797
        %v824 = vpack.c.b16 %v800, %v798
        %v825 = vpack.c.b16 %v803, %v801
        %v826 = vpack.c.b16 %v804, %v802
        %v827 = vpack.c.b16 %v807, %v805
        %v828 = vpack.c.b16 %v808, %v806
        %v829 = vpack.c.b16 %v811, %v809
        %v830 = vpack.c.b16 %v812, %v810
        %v831 = vpack.c.b16 %v815, %v813
        %v832 = vpack.c.b16 %v816, %v814
        %849 = vmatpush.bf16.msra.mxu0 %v831
        %850 = vmatpush.bf16.msra.mxu0 %v829
        %851 = vmatpush.bf16.msra.mxu0 %v827
        %852 = vmatpush.bf16.msra.mxu0 %v825
        %853 = vmatpush.bf16.msra.mxu0 %v823
        %854 = vmatpush.bf16.msra.mxu0 %v821
        %855 = vmatpush.bf16.msra.mxu0 %v819
        %856 = vmatpush.bf16.msra.mxu0 %v817
        %857 = vmatmul.bf16.gmra.mxu0 %v735
        %v858 = vpop.f32.mrf.mxu0
        %v859 = vadd.f32 0.0, %v858
        %v860 = vpop.f32.mrf.mxu0
        %v861 = vadd.f32 0.0, %v860
        %862 = vdwg.mxu0
        %863 = vmatpush.bf16.msra.mxu0 %v832
        %864 = vmatpush.bf16.msra.mxu0 %v830
        %865 = vmatpush.bf16.msra.mxu0 %v828
        %866 = vmatpush.bf16.msra.mxu0 %v826
        %867 = vmatpush.bf16.msra.mxu0 %v824
        %868 = vmatpush.bf16.msra.mxu0 %v822
        %869 = vmatpush.bf16.msra.mxu0 %v820
        %870 = vmatpush.bf16.msra.mxu0 %v818
        %871 = vmatmul.bf16.gmra.mxu0 %v735
        %v872 = vpop.f32.mrf.mxu0
        %v873 = vadd.f32 0.0, %v872
        %v874 = vpop.f32.mrf.mxu0
        %v875 = vadd.f32 0.0, %v874
        %876 = vdwg.mxu0
        %v893 = vunpack.c.l.b16 %v736
        %v894 = vunpack.c.h.b16 %v736
        %v895 = vunpack.c.l.b16 %v737
        %v896 = vunpack.c.h.b16 %v737
        %v897 = vunpack.c.l.b16 %v738
        %v898 = vunpack.c.h.b16 %v738
        %v899 = vunpack.c.l.b16 %v739
        %v900 = vunpack.c.h.b16 %v739
        %v901 = vunpack.c.l.b16 %v740
        %v902 = vunpack.c.h.b16 %v740
        %v903 = vunpack.c.l.b16 %v741
        %v904 = vunpack.c.h.b16 %v741
        %v905 = vunpack.c.l.b16 %v742
        %v906 = vunpack.c.h.b16 %v742
        %v907 = vunpack.c.l.b16 %v743
        %v908 = vunpack.c.h.b16 %v743
        %v909 = vunpack.c.l.b16 %v744
        %v910 = vunpack.c.h.b16 %v744
        %v911 = vunpack.c.l.b16 %v745
        %v912 = vunpack.c.h.b16 %v745
        %v913 = vunpack.c.l.b16 %v746
        %v914 = vunpack.c.h.b16 %v746
        %v915 = vunpack.c.l.b16 %v747
        %v916 = vunpack.c.h.b16 %v747
        %v917 = vunpack.c.l.b16 %v748
        %v918 = vunpack.c.h.b16 %v748
        %v919 = vunpack.c.l.b16 %v749
        %v920 = vunpack.c.h.b16 %v749
        %v921 = vunpack.c.l.b16 %v750
        %v922 = vunpack.c.h.b16 %v750
        %v923 = vunpack.c.l.b16 %v751
        %v924 = vunpack.c.h.b16 %v751
        %v925 = vpack.c.b16 %v895, %v893
        %v926 = vpack.c.b16 %v896, %v894
        %v927 = vpack.c.b16 %v899, %v897
        %v928 = vpack.c.b16 %v900, %v898
        %v929 = vpack.c.b16 %v903, %v901
        %v930 = vpack.c.b16 %v904, %v902
        %v931 = vpack.c.b16 %v907, %v905
        %v932 = vpack.c.b16 %v908, %v906
        %v933 = vpack.c.b16 %v911, %v909
        %v934 = vpack.c.b16 %v912, %v910
        %v935 = vpack.c.b16 %v915, %v913
        %v936 = vpack.c.b16 %v916, %v914
        %v937 = vpack.c.b16 %v919, %v917
        %v938 = vpack.c.b16 %v920, %v918
        %v939 = vpack.c.b16 %v923, %v921
        %v940 = vpack.c.b16 %v924, %v922
        %957 = vmatpush.bf16.msra.mxu0 %v939
        %958 = vmatpush.bf16.msra.mxu0 %v937
        %959 = vmatpush.bf16.msra.mxu0 %v935
        %960 = vmatpush.bf16.msra.mxu0 %v933
        %961 = vmatpush.bf16.msra.mxu0 %v931
        %962 = vmatpush.bf16.msra.mxu0 %v929
        %963 = vmatpush.bf16.msra.mxu0 %v927
        %964 = vmatpush.bf16.msra.mxu0 %v925
        %965 = vmatmul.bf16.gmra.mxu0 %v716
        %v966 = vpop.f32.mrf.mxu0
        %v967 = vadd.f32 %v859, %v966
        %v968 = vpop.f32.mrf.mxu0
        %v969 = vadd.f32 %v861, %v968
        %970 = vdwg.mxu0
        %971 = vmatpush.bf16.msra.mxu0 %v940
        %972 = vmatpush.bf16.msra.mxu0 %v938
        %973 = vmatpush.bf16.msra.mxu0 %v936
        %974 = vmatpush.bf16.msra.mxu0 %v934
        %975 = vmatpush.bf16.msra.mxu0 %v932
        %976 = vmatpush.bf16.msra.mxu0 %v930
        %977 = vmatpush.bf16.msra.mxu0 %v928
        %978 = vmatpush.bf16.msra.mxu0 %v926
        %979 = vmatmul.bf16.gmra.mxu0 %v716
        %v980 = vpop.f32.mrf.mxu0
        %v981 = vadd.f32 %v873, %v980
        %v982 = vpop.f32.mrf.mxu0
        %v983 = vadd.f32 %v875, %v982
        %984 = vdwg.mxu0
        %v985 = vld [vmem:[%s9] sm:$0x3]
        %v987 = vperm.slane %v985, 0
        %v988 = vperm.slane %v985, 1
        %v991 = vadd.f32 %v967, %v987
        %v992 = vadd.f32 %v981, %v988
        %v993 = vadd.f32 %v969, %v987
        %v994 = vadd.f32 %v983, %v988
        %v995 = vmul.f32 %v991, 0.01
        %v996 = vmul.f32 %v992, 0.01
        %v997 = vmul.f32 %v993, 0.01
        %v998 = vmul.f32 %v994, 0.01
        %v999 = vmax.f32 %v991, %v995
        %v1000 = vmax.f32 %v992, %v996
        %v1001 = vmax.f32 %v993, %v997
        %v1002 = vmax.f32 %v994, %v998
        %vm1003 = vcmp.lt.s32.totalorder %v700, 0
        %v1004 = vsub.s32 0, %v700
        %v1005 = vsel %vm1003, %v1004, %v700
        %v1006 = vshrl.u32 %v1005, 4
        %v1007 = vand.u32 %v1005, 15
        %v1008 = vsub.s32 0, %v1007
        %v1009 = vsel %vm1003, %v1008, %v1007
        %vm1010 = vcmp.lt.s32.totalorder %v701, 0
        %v1011 = vsub.s32 0, %v701
        %v1012 = vsel %vm1010, %v1011, %v701
        %v1013 = vshrl.u32 %v1012, 4
        %v1014 = vand.u32 %v1012, 15
        %v1015 = vsub.s32 0, %v1014
        %v1016 = vsel %vm1010, %v1015, %v1014
        %vm1017 = vcmp.ne.s32.totalorder %v1009, 0
        %vm1018 = vcmp.ne.s32.totalorder %v1016, 0
        %vm1019 = vcmp.lt.s32.totalorder %v1009, 0
        %vm1020 = vcmp.lt.s32.totalorder %v1016, 0
        %vm1021 = vmand %vm1019, %vm1017
        %vm1022 = vmand %vm1020, %vm1018
        %v1023 = vadd.s32 %v1009, 16
        %v1024 = vadd.s32 %v1016, 16
        %v1025 = vsel %vm1021, %v1023, %v1009
        %v1026 = vsel %vm1022, %v1024, %v1016
        %vm1027 = vcmp.ge.s32.totalorder %v1025, 1
        %vm1028 = vcmp.ge.s32.totalorder %v1026, 1
        %vm1029 = vcmp.le.s32.totalorder %v1025, 5
        %vm1030 = vcmp.le.s32.totalorder %v1026, 5
        %vm1031 = vmand %vm1027, %vm1029
        %vm1032 = vmand %vm1028, %vm1030
        %v1033 = vsel %vm1031, %v999, 0.0
        %v1034 = vsel %vm1031, %v1000, 0.0
        %v1035 = vsel %vm1032, %v1001, 0.0
        %v1036 = vsel %vm1032, %v1002, 0.0
        %v1037 = vld [vmem:[%s588] sm:$0xff]
        %v1038 = vld [vmem:[%s588 + $0x8] sm:$0xff]
        %v1039 = vld [vmem:[%s588 + $0x10] sm:$0xff]
        %v1040 = vld [vmem:[%s588 + $0x18] sm:$0xff]
        %v1041 = vadd.f32 %v1033, %v1037
        %v1042 = vadd.f32 %v1034, %v1038
        %v1043 = vadd.f32 %v1035, %v1039
        %v1044 = vadd.f32 %v1036, %v1040
        %v1045 = vpack.c.bf16 %v1043, %v1041
        %v1046 = vpack.c.bf16 %v1044, %v1042
        %1047 = vmatpush.bf16.msra.mxu0 0
        %1048 = vmatpush.bf16.msra.mxu0 0
        %1049 = vmatpush.bf16.msra.mxu0 0
        %1050 = vmatpush.bf16.msra.mxu0 0
        %1051 = vmatpush.bf16.msra.mxu0 0
        %1052 = vmatpush.bf16.msra.mxu0 0
        %1053 = vmatpush.bf16.msra.mxu0 0
        %1054 = vmatpush.bf16.msra.mxu0 %v1045
        %1055 = vmatmul.bf16.gmra.mxu0 %v719
        %v1056 = vpop.f32.mrf.mxu0
        %v1057 = vadd.f32 0.0, %v1056
        %v1058 = vpop.f32.mrf.mxu0
        %v1059 = vadd.f32 0.0, %v1058
        %1060 = vdwg.mxu0
        %1061 = vmatpush.bf16.msra.mxu0 0
        %1062 = vmatpush.bf16.msra.mxu0 0
        %1063 = vmatpush.bf16.msra.mxu0 0
        %1064 = vmatpush.bf16.msra.mxu0 0
        %1065 = vmatpush.bf16.msra.mxu0 0
        %1066 = vmatpush.bf16.msra.mxu0 0
        %1067 = vmatpush.bf16.msra.mxu0 0
        %1068 = vmatpush.bf16.msra.mxu0 %v1046
        %1069 = vmatmul.bf16.gmra.mxu0 %v719
        %v1070 = vpop.f32.mrf.mxu0
        %v1071 = vadd.f32 0.0, %v1070
        %v1072 = vpop.f32.mrf.mxu0
        %v1073 = vadd.f32 0.0, %v1072
        %1074 = vdwg.mxu0
        %v1075 = vpack.c.bf16 %v1059, %v1057
        %v1076 = vpack.c.bf16 %v1073, %v1071
        %v1077 = vld [vmem:[#allocation13] sm:$0xff]
        %v1078 = vld [vmem:[#allocation13 + $0x8] sm:$0xff]
        %v1079 = vld [vmem:[#allocation13 + $0x10] sm:$0xff]
        %v1080 = vld [vmem:[#allocation13 + $0x18] sm:$0xff]
        %v1081 = vld [vmem:[#allocation13 + $0x20] sm:$0xff]
        %v1082 = vld [vmem:[#allocation13 + $0x28] sm:$0xff]
        %v1083 = vld [vmem:[#allocation13 + $0x30] sm:$0xff]
        %v1084 = vld [vmem:[#allocation13 + $0x38] sm:$0xff]
        %v1085 = vld [vmem:[#allocation13 + $0x40] sm:$0xff]
        %v1086 = vld [vmem:[#allocation13 + $0x48] sm:$0xff]
        %v1087 = vld [vmem:[#allocation13 + $0x50] sm:$0xff]
        %v1088 = vld [vmem:[#allocation13 + $0x58] sm:$0xff]
        %v1089 = vld [vmem:[#allocation13 + $0x60] sm:$0xff]
        %v1090 = vld [vmem:[#allocation13 + $0x68] sm:$0xff]
        %v1091 = vld [vmem:[#allocation13 + $0x70] sm:$0xff]
        %v1092 = vld [vmem:[#allocation13 + $0x78] sm:$0xff]
        %v1093 = vld [vmem:[#allocation13 + $0x80] sm:$0xff]
        %v1094 = vld [vmem:[#allocation13 + $0x88] sm:$0xff]
        %v1095 = vld [vmem:[#allocation13 + $0x90] sm:$0xff]
        %v1096 = vld [vmem:[#allocation13 + $0x98] sm:$0xff]
        %v1097 = vld [vmem:[#allocation13 + $0xa0] sm:$0xff]
        %v1098 = vld [vmem:[#allocation13 + $0xa8] sm:$0xff]
        %v1099 = vld [vmem:[#allocation13 + $0xb0] sm:$0xff]
        %v1100 = vld [vmem:[#allocation13 + $0xb8] sm:$0xff]
        %v1101 = vld [vmem:[#allocation13 + $0xc0] sm:$0xff]
        %v1102 = vld [vmem:[#allocation13 + $0xc8] sm:$0xff]
        %v1103 = vld [vmem:[#allocation13 + $0xd0] sm:$0xff]
        %v1104 = vld [vmem:[#allocation13 + $0xd8] sm:$0xff]
        %v1105 = vld [vmem:[#allocation13 + $0xe0] sm:$0xff]
        %v1106 = vld [vmem:[#allocation13 + $0xe8] sm:$0xff]
        %v1107 = vld [vmem:[#allocation13 + $0xf0] sm:$0xff]
        %v1108 = vld [vmem:[#allocation13 + $0xf8] sm:$0xff]
        %s1109 = scalar_lea.vmem [#allocation13], 256
        %v1110 = vld [vmem:[%s1109] sm:$0xff]
        %v1111 = vld [vmem:[%s1109 + $0x8] sm:$0xff]
        %v1112 = vld [vmem:[%s1109 + $0x10] sm:$0xff]
        %v1113 = vld [vmem:[%s1109 + $0x18] sm:$0xff]
        %v1114 = vld [vmem:[%s1109 + $0x20] sm:$0xff]
        %v1115 = vld [vmem:[%s1109 + $0x28] sm:$0xff]
        %v1116 = vld [vmem:[%s1109 + $0x30] sm:$0xff]
        %v1117 = vld [vmem:[%s1109 + $0x38] sm:$0xff]
        %v1118 = vld [vmem:[%s1109 + $0x40] sm:$0xff]
        %v1119 = vld [vmem:[%s1109 + $0x48] sm:$0xff]
        %v1120 = vld [vmem:[%s1109 + $0x50] sm:$0xff]
        %v1121 = vld [vmem:[%s1109 + $0x58] sm:$0xff]
        %v1122 = vld [vmem:[%s1109 + $0x60] sm:$0xff]
        %v1123 = vld [vmem:[%s1109 + $0x68] sm:$0xff]
        %v1124 = vld [vmem:[%s1109 + $0x70] sm:$0xff]
        %v1125 = vld [vmem:[%s1109 + $0x78] sm:$0xff]
        %v1126 = vld [vmem:[%s1109 + $0x80] sm:$0xff]
        %v1127 = vld [vmem:[%s1109 + $0x88] sm:$0xff]
        %v1128 = vld [vmem:[%s1109 + $0x90] sm:$0xff]
        %v1129 = vld [vmem:[%s1109 + $0x98] sm:$0xff]
        %v1130 = vld [vmem:[%s1109 + $0xa0] sm:$0xff]
        %v1131 = vld [vmem:[%s1109 + $0xa8] sm:$0xff]
        %v1132 = vld [vmem:[%s1109 + $0xb0] sm:$0xff]
        %v1133 = vld [vmem:[%s1109 + $0xb8] sm:$0xff]
        %v1134 = vld [vmem:[%s1109 + $0xc0] sm:$0xff]
        %v1135 = vld [vmem:[%s1109 + $0xc8] sm:$0xff]
        %v1136 = vld [vmem:[%s1109 + $0xd0] sm:$0xff]
        %v1137 = vld [vmem:[%s1109 + $0xd8] sm:$0xff]
        %v1138 = vld [vmem:[%s1109 + $0xe0] sm:$0xff]
        %v1139 = vld [vmem:[%s1109 + $0xe8] sm:$0xff]
        %v1140 = vld [vmem:[%s1109 + $0xf0] sm:$0xff]
        %v1141 = vld [vmem:[%s1109 + $0xf8] sm:$0xff]
        %v1174 = vunpack.c.l.b16 %v1110
        %v1175 = vunpack.c.h.b16 %v1110
        %v1176 = vunpack.c.l.b16 %v1111
        %v1177 = vunpack.c.h.b16 %v1111
        %v1178 = vunpack.c.l.b16 %v1112
        %v1179 = vunpack.c.h.b16 %v1112
        %v1180 = vunpack.c.l.b16 %v1113
        %v1181 = vunpack.c.h.b16 %v1113
        %v1182 = vunpack.c.l.b16 %v1114
        %v1183 = vunpack.c.h.b16 %v1114
        %v1184 = vunpack.c.l.b16 %v1115
        %v1185 = vunpack.c.h.b16 %v1115
        %v1186 = vunpack.c.l.b16 %v1116
        %v1187 = vunpack.c.h.b16 %v1116
        %v1188 = vunpack.c.l.b16 %v1117
        %v1189 = vunpack.c.h.b16 %v1117
        %v1190 = vunpack.c.l.b16 %v1118
        %v1191 = vunpack.c.h.b16 %v1118
        %v1192 = vunpack.c.l.b16 %v1119
        %v1193 = vunpack.c.h.b16 %v1119
        %v1194 = vunpack.c.l.b16 %v1120
        %v1195 = vunpack.c.h.b16 %v1120
        %v1196 = vunpack.c.l.b16 %v1121
        %v1197 = vunpack.c.h.b16 %v1121
        %v1198 = vunpack.c.l.b16 %v1122
        %v1199 = vunpack.c.h.b16 %v1122
        %v1200 = vunpack.c.l.b16 %v1123
        %v1201 = vunpack.c.h.b16 %v1123
        %v1202 = vunpack.c.l.b16 %v1124
        %v1203 = vunpack.c.h.b16 %v1124
        %v1204 = vunpack.c.l.b16 %v1125
        %v1205 = vunpack.c.h.b16 %v1125
        %v1206 = vunpack.c.l.b16 %v1126
        %v1207 = vunpack.c.h.b16 %v1126
        %v1208 = vunpack.c.l.b16 %v1127
        %v1209 = vunpack.c.h.b16 %v1127
        %v1210 = vunpack.c.l.b16 %v1128
        %v1211 = vunpack.c.h.b16 %v1128
        %v1212 = vunpack.c.l.b16 %v1129
        %v1213 = vunpack.c.h.b16 %v1129
        %v1214 = vunpack.c.l.b16 %v1130
        %v1215 = vunpack.c.h.b16 %v1130
        %v1216 = vunpack.c.l.b16 %v1131
        %v1217 = vunpack.c.h.b16 %v1131
        %v1218 = vunpack.c.l.b16 %v1132
        %v1219 = vunpack.c.h.b16 %v1132
        %v1220 = vunpack.c.l.b16 %v1133
        %v1221 = vunpack.c.h.b16 %v1133
        %v1222 = vunpack.c.l.b16 %v1134
        %v1223 = vunpack.c.h.b16 %v1134
        %v1224 = vunpack.c.l.b16 %v1135
        %v1225 = vunpack.c.h.b16 %v1135
        %v1226 = vunpack.c.l.b16 %v1136
        %v1227 = vunpack.c.h.b16 %v1136
        %v1228 = vunpack.c.l.b16 %v1137
        %v1229 = vunpack.c.h.b16 %v1137
        %v1230 = vunpack.c.l.b16 %v1138
        %v1231 = vunpack.c.h.b16 %v1138
        %v1232 = vunpack.c.l.b16 %v1139
        %v1233 = vunpack.c.h.b16 %v1139
        %v1234 = vunpack.c.l.b16 %v1140
        %v1235 = vunpack.c.h.b16 %v1140
        %v1236 = vunpack.c.l.b16 %v1141
        %v1237 = vunpack.c.h.b16 %v1141
        %v1238 = vpack.c.b16 %v1176, %v1174
        %v1239 = vpack.c.b16 %v1177, %v1175
        %v1240 = vpack.c.b16 %v1180, %v1178
        %v1241 = vpack.c.b16 %v1181, %v1179
        %v1242 = vpack.c.b16 %v1184, %v1182
        %v1243 = vpack.c.b16 %v1185, %v1183
        %v1244 = vpack.c.b16 %v1188, %v1186
        %v1245 = vpack.c.b16 %v1189, %v1187
        %v1246 = vpack.c.b16 %v1192, %v1190
        %v1247 = vpack.c.b16 %v1193, %v1191
        %v1248 = vpack.c.b16 %v1196, %v1194
        %v1249 = vpack.c.b16 %v1197, %v1195
        %v1250 = vpack.c.b16 %v1200, %v1198
        %v1251 = vpack.c.b16 %v1201, %v1199
        %v1252 = vpack.c.b16 %v1204, %v1202
        %v1253 = vpack.c.b16 %v1205, %v1203
        %v1254 = vpack.c.b16 %v1208, %v1206
        %v1255 = vpack.c.b16 %v1209, %v1207
        %v1256 = vpack.c.b16 %v1212, %v1210
        %v1257 = vpack.c.b16 %v1213, %v1211
        %v1258 = vpack.c.b16 %v1216, %v1214
        %v1259 = vpack.c.b16 %v1217, %v1215
        %v1260 = vpack.c.b16 %v1220, %v1218
        %v1261 = vpack.c.b16 %v1221, %v1219
        %v1262 = vpack.c.b16 %v1224, %v1222
        %v1263 = vpack.c.b16 %v1225, %v1223
        %v1264 = vpack.c.b16 %v1228, %v1226
        %v1265 = vpack.c.b16 %v1229, %v1227
        %v1266 = vpack.c.b16 %v1232, %v1230
        %v1267 = vpack.c.b16 %v1233, %v1231
        %v1268 = vpack.c.b16 %v1236, %v1234
        %v1269 = vpack.c.b16 %v1237, %v1235
        %1302 = vmatpush.bf16.msra.mxu0 %v1252
        %1303 = vmatpush.bf16.msra.mxu0 %v1250
        %1304 = vmatpush.bf16.msra.mxu0 %v1248
        %1305 = vmatpush.bf16.msra.mxu0 %v1246
        %1306 = vmatpush.bf16.msra.mxu0 %v1244
        %1307 = vmatpush.bf16.msra.mxu0 %v1242
        %1308 = vmatpush.bf16.msra.mxu0 %v1240
        %1309 = vmatpush.bf16.msra.mxu0 %v1238
        %1310 = vmatmul.bf16.gmra.mxu0 %v1075
        %v1311 = vpop.f32.mrf.mxu0
        %v1312 = vadd.f32 0.0, %v1311
        %v1313 = vpop.f32.mrf.mxu0
        %v1314 = vadd.f32 0.0, %v1313
        %1315 = vdwg.mxu0
        %1316 = vmatpush.bf16.msra.mxu0 %v1268
        %1317 = vmatpush.bf16.msra.mxu0 %v1266
        %1318 = vmatpush.bf16.msra.mxu0 %v1264
        %1319 = vmatpush.bf16.msra.mxu0 %v1262
        %1320 = vmatpush.bf16.msra.mxu0 %v1260
        %1321 = vmatpush.bf16.msra.mxu0 %v1258
        %1322 = vmatpush.bf16.msra.mxu0 %v1256
        %1323 = vmatpush.bf16.msra.mxu0 %v1254
        %1324 = vmatmul.bf16.gmra.mxu0 %v1076
        %v1325 = vpop.f32.mrf.mxu0
        %v1326 = vadd.f32 %v1312, %v1325
        %v1327 = vpop.f32.mrf.mxu0
        %v1328 = vadd.f32 %v1314, %v1327
        %1329 = vdwg.mxu0
        %1330 = vmatpush.bf16.msra.mxu0 %v1253
        %1331 = vmatpush.bf16.msra.mxu0 %v1251
        %1332 = vmatpush.bf16.msra.mxu0 %v1249
        %1333 = vmatpush.bf16.msra.mxu0 %v1247
        %1334 = vmatpush.bf16.msra.mxu0 %v1245
        %1335 = vmatpush.bf16.msra.mxu0 %v1243
        %1336 = vmatpush.bf16.msra.mxu0 %v1241
        %1337 = vmatpush.bf16.msra.mxu0 %v1239
        %1338 = vmatmul.bf16.gmra.mxu0 %v1075
        %v1339 = vpop.f32.mrf.mxu0
        %v1340 = vadd.f32 0.0, %v1339
        %v1341 = vpop.f32.mrf.mxu0
        %v1342 = vadd.f32 0.0, %v1341
        %1343 = vdwg.mxu0
        %1344 = vmatpush.bf16.msra.mxu0 %v1269
        %1345 = vmatpush.bf16.msra.mxu0 %v1267
        %1346 = vmatpush.bf16.msra.mxu0 %v1265
        %1347 = vmatpush.bf16.msra.mxu0 %v1263
        %1348 = vmatpush.bf16.msra.mxu0 %v1261
        %1349 = vmatpush.bf16.msra.mxu0 %v1259
        %1350 = vmatpush.bf16.msra.mxu0 %v1257
        %1351 = vmatpush.bf16.msra.mxu0 %v1255
        %1352 = vmatmul.bf16.gmra.mxu0 %v1076
        %v1353 = vpop.f32.mrf.mxu0
        %v1354 = vadd.f32 %v1340, %v1353
        %v1355 = vpop.f32.mrf.mxu0
        %v1356 = vadd.f32 %v1342, %v1355
        %1357 = vdwg.mxu0
        %v1390 = vunpack.c.l.b16 %v1077
        %v1391 = vunpack.c.h.b16 %v1077
        %v1392 = vunpack.c.l.b16 %v1078
        %v1393 = vunpack.c.h.b16 %v1078
        %v1394 = vunpack.c.l.b16 %v1079
        %v1395 = vunpack.c.h.b16 %v1079
        %v1396 = vunpack.c.l.b16 %v1080
        %v1397 = vunpack.c.h.b16 %v1080
        %v1398 = vunpack.c.l.b16 %v1081
        %v1399 = vunpack.c.h.b16 %v1081
        %v1400 = vunpack.c.l.b16 %v1082
        %v1401 = vunpack.c.h.b16 %v1082
        %v1402 = vunpack.c.l.b16 %v1083
        %v1403 = vunpack.c.h.b16 %v1083
        %v1404 = vunpack.c.l.b16 %v1084
        %v1405 = vunpack.c.h.b16 %v1084
        %v1406 = vunpack.c.l.b16 %v1085
        %v1407 = vunpack.c.h.b16 %v1085
        %v1408 = vunpack.c.l.b16 %v1086
        %v1409 = vunpack.c.h.b16 %v1086
        %v1410 = vunpack.c.l.b16 %v1087
        %v1411 = vunpack.c.h.b16 %v1087
        %v1412 = vunpack.c.l.b16 %v1088
        %v1413 = vunpack.c.h.b16 %v1088
        %v1414 = vunpack.c.l.b16 %v1089
        %v1415 = vunpack.c.h.b16 %v1089
        %v1416 = vunpack.c.l.b16 %v1090
        %v1417 = vunpack.c.h.b16 %v1090
        %v1418 = vunpack.c.l.b16 %v1091
        %v1419 = vunpack.c.h.b16 %v1091
        %v1420 = vunpack.c.l.b16 %v1092
        %v1421 = vunpack.c.h.b16 %v1092
        %v1422 = vunpack.c.l.b16 %v1093
        %v1423 = vunpack.c.h.b16 %v1093
        %v1424 = vunpack.c.l.b16 %v1094
        %v1425 = vunpack.c.h.b16 %v1094
        %v1426 = vunpack.c.l.b16 %v1095
        %v1427 = vunpack.c.h.b16 %v1095
        %v1428 = vunpack.c.l.b16 %v1096
        %v1429 = vunpack.c.h.b16 %v1096
        %v1430 = vunpack.c.l.b16 %v1097
        %v1431 = vunpack.c.h.b16 %v1097
        %v1432 = vunpack.c.l.b16 %v1098
        %v1433 = vunpack.c.h.b16 %v1098
        %v1434 = vunpack.c.l.b16 %v1099
        %v1435 = vunpack.c.h.b16 %v1099
        %v1436 = vunpack.c.l.b16 %v1100
        %v1437 = vunpack.c.h.b16 %v1100
        %v1438 = vunpack.c.l.b16 %v1101
        %v1439 = vunpack.c.h.b16 %v1101
        %v1440 = vunpack.c.l.b16 %v1102
        %v1441 = vunpack.c.h.b16 %v1102
        %v1442 = vunpack.c.l.b16 %v1103
        %v1443 = vunpack.c.h.b16 %v1103
        %v1444 = vunpack.c.l.b16 %v1104
        %v1445 = vunpack.c.h.b16 %v1104
        %v1446 = vunpack.c.l.b16 %v1105
        %v1447 = vunpack.c.h.b16 %v1105
        %v1448 = vunpack.c.l.b16 %v1106
        %v1449 = vunpack.c.h.b16 %v1106
        %v1450 = vunpack.c.l.b16 %v1107
        %v1451 = vunpack.c.h.b16 %v1107
        %v1452 = vunpack.c.l.b16 %v1108
        %v1453 = vunpack.c.h.b16 %v1108
        %v1454 = vpack.c.b16 %v1392, %v1390
        %v1455 = vpack.c.b16 %v1393, %v1391
        %v1456 = vpack.c.b16 %v1396, %v1394
        %v1457 = vpack.c.b16 %v1397, %v1395
        %v1458 = vpack.c.b16 %v1400, %v1398
        %v1459 = vpack.c.b16 %v1401, %v1399
        %v1460 = vpack.c.b16 %v1404, %v1402
        %v1461 = vpack.c.b16 %v1405, %v1403
        %v1462 = vpack.c.b16 %v1408, %v1406
        %v1463 = vpack.c.b16 %v1409, %v1407
        %v1464 = vpack.c.b16 %v1412, %v1410
        %v1465 = vpack.c.b16 %v1413, %v1411
        %v1466 = vpack.c.b16 %v1416, %v1414
        %v1467 = vpack.c.b16 %v1417, %v1415
        %v1468 = vpack.c.b16 %v1420, %v1418
        %v1469 = vpack.c.b16 %v1421, %v1419
        %v1470 = vpack.c.b16 %v1424, %v1422
        %v1471 = vpack.c.b16 %v1425, %v1423
        %v1472 = vpack.c.b16 %v1428, %v1426
        %v1473 = vpack.c.b16 %v1429, %v1427
        %v1474 = vpack.c.b16 %v1432, %v1430
        %v1475 = vpack.c.b16 %v1433, %v1431
        %v1476 = vpack.c.b16 %v1436, %v1434
        %v1477 = vpack.c.b16 %v1437, %v1435
        %v1478 = vpack.c.b16 %v1440, %v1438
        %v1479 = vpack.c.b16 %v1441, %v1439
        %v1480 = vpack.c.b16 %v1444, %v1442
        %v1481 = vpack.c.b16 %v1445, %v1443
        %v1482 = vpack.c.b16 %v1448, %v1446
        %v1483 = vpack.c.b16 %v1449, %v1447
        %v1484 = vpack.c.b16 %v1452, %v1450
        %v1485 = vpack.c.b16 %v1453, %v1451
        %1518 = vmatpush.bf16.msra.mxu0 %v1468
        %1519 = vmatpush.bf16.msra.mxu0 %v1466
        %1520 = vmatpush.bf16.msra.mxu0 %v1464
        %1521 = vmatpush.bf16.msra.mxu0 %v1462
        %1522 = vmatpush.bf16.msra.mxu0 %v1460
        %1523 = vmatpush.bf16.msra.mxu0 %v1458
        %1524 = vmatpush.bf16.msra.mxu0 %v1456
        %1525 = vmatpush.bf16.msra.mxu0 %v1454
        %1526 = vmatmul.bf16.gmra.mxu0 %v1045
        %v1527 = vpop.f32.mrf.mxu0
        %v1528 = vadd.f32 %v1326, %v1527
        %v1529 = vpop.f32.mrf.mxu0
        %v1530 = vadd.f32 %v1328, %v1529
        %1531 = vdwg.mxu0
        %1532 = vmatpush.bf16.msra.mxu0 %v1484
        %1533 = vmatpush.bf16.msra.mxu0 %v1482
        %1534 = vmatpush.bf16.msra.mxu0 %v1480
        %1535 = vmatpush.bf16.msra.mxu0 %v1478
        %1536 = vmatpush.bf16.msra.mxu0 %v1476
        %1537 = vmatpush.bf16.msra.mxu0 %v1474
        %1538 = vmatpush.bf16.msra.mxu0 %v1472
        %1539 = vmatpush.bf16.msra.mxu0 %v1470
        %1540 = vmatmul.bf16.gmra.mxu0 %v1046
        %v1541 = vpop.f32.mrf.mxu0
        %v1542 = vadd.f32 %v1528, %v1541
        %v1543 = vpop.f32.mrf.mxu0
        %v1544 = vadd.f32 %v1530, %v1543
        %1545 = vdwg.mxu0
        %1546 = vmatpush.bf16.msra.mxu0 %v1469
        %1547 = vmatpush.bf16.msra.mxu0 %v1467
        %1548 = vmatpush.bf16.msra.mxu0 %v1465
        %1549 = vmatpush.bf16.msra.mxu0 %v1463
        %1550 = vmatpush.bf16.msra.mxu0 %v1461
        %1551 = vmatpush.bf16.msra.mxu0 %v1459
        %1552 = vmatpush.bf16.msra.mxu0 %v1457
        %1553 = vmatpush.bf16.msra.mxu0 %v1455
        %1554 = vmatmul.bf16.gmra.mxu0 %v1045
        %v1555 = vpop.f32.mrf.mxu0
        %v1556 = vadd.f32 %v1354, %v1555
        %v1557 = vpop.f32.mrf.mxu0
        %v1558 = vadd.f32 %v1356, %v1557
        %1559 = vdwg.mxu0
        %1560 = vmatpush.bf16.msra.mxu0 %v1485
        %1561 = vmatpush.bf16.msra.mxu0 %v1483
        %1562 = vmatpush.bf16.msra.mxu0 %v1481
        %1563 = vmatpush.bf16.msra.mxu0 %v1479
        %1564 = vmatpush.bf16.msra.mxu0 %v1477
        %1565 = vmatpush.bf16.msra.mxu0 %v1475
        %1566 = vmatpush.bf16.msra.mxu0 %v1473
        %1567 = vmatpush.bf16.msra.mxu0 %v1471
        %1568 = vmatmul.bf16.gmra.mxu0 %v1046
        %v1569 = vpop.f32.mrf.mxu0
        %v1570 = vadd.f32 %v1556, %v1569
        %v1571 = vpop.f32.mrf.mxu0
        %v1572 = vadd.f32 %v1558, %v1571
        %1573 = vdwg.mxu0
        %v1574 = vld [vmem:[%s10] sm:$0x3]
        %v1576 = vperm.slane %v1574, 0
        %v1577 = vperm.slane %v1574, 1
        %v1580 = vadd.f32 %v1542, %v1576
        %v1581 = vadd.f32 %v1570, %v1577
        %v1582 = vadd.f32 %v1544, %v1576
        %v1583 = vadd.f32 %v1572, %v1577
        %v1584 = vmul.f32 %v1580, 0.01
        %v1585 = vmul.f32 %v1581, 0.01
        %v1586 = vmul.f32 %v1582, 0.01
        %v1587 = vmul.f32 %v1583, 0.01
        %v1588 = vmax.f32 %v1580, %v1584
        %v1589 = vmax.f32 %v1581, %v1585
        %v1590 = vmax.f32 %v1582, %v1586
        %v1591 = vmax.f32 %v1583, %v1587
        %vm1592 = vcmp.le.s32.totalorder %v1025, 6
        %vm1593 = vcmp.le.s32.totalorder %v1026, 6
        %vm1594 = vmand %vm1027, %vm1592
        %vm1595 = vmand %vm1028, %vm1593
        %v1596 = vsel %vm1594, %v1588, 0.0
        %v1597 = vsel %vm1594, %v1589, 0.0
        %v1598 = vsel %vm1595, %v1590, 0.0
        %v1599 = vsel %vm1595, %v1591, 0.0
        %v1600 = vld [vmem:[%s598] sm:$0xff]
        %v1601 = vld [vmem:[%s598 + $0x8] sm:$0xff]
        %v1602 = vld [vmem:[%s598 + $0x10] sm:$0xff]
        %v1603 = vld [vmem:[%s598 + $0x18] sm:$0xff]
        %v1604 = vadd.f32 %v1596, %v1600
        %v1605 = vadd.f32 %v1597, %v1601
        %v1606 = vadd.f32 %v1598, %v1602
        %v1607 = vadd.f32 %v1599, %v1603
        %v1608 = vpack.c.bf16 %v1606, %v1604
        %v1609 = vpack.c.bf16 %v1607, %v1605
        %1610 = vmatpush.bf16.msra.mxu0 0
        %1611 = vmatpush.bf16.msra.mxu0 0
        %1612 = vmatpush.bf16.msra.mxu0 0
        %1613 = vmatpush.bf16.msra.mxu0 0
        %1614 = vmatpush.bf16.msra.mxu0 0
        %1615 = vmatpush.bf16.msra.mxu0 0
        %1616 = vmatpush.bf16.msra.mxu0 0
        %1617 = vmatpush.bf16.msra.mxu0 %v1608
        %1618 = vmatmul.bf16.gmra.mxu0 %v719
        %v1619 = vpop.f32.mrf.mxu0
        %v1620 = vadd.f32 0.0, %v1619
        %v1621 = vpop.f32.mrf.mxu0
        %v1622 = vadd.f32 0.0, %v1621
        %1623 = vdwg.mxu0
        %1624 = vmatpush.bf16.msra.mxu0 0
        %1625 = vmatpush.bf16.msra.mxu0 0
        %1626 = vmatpush.bf16.msra.mxu0 0
        %1627 = vmatpush.bf16.msra.mxu0 0
        %1628 = vmatpush.bf16.msra.mxu0 0
        %1629 = vmatpush.bf16.msra.mxu0 0
        %1630 = vmatpush.bf16.msra.mxu0 0
        %1631 = vmatpush.bf16.msra.mxu0 %v1609
        %1632 = vmatmul.bf16.gmra.mxu0 %v719
        %v1633 = vpop.f32.mrf.mxu0
        %v1634 = vadd.f32 0.0, %v1633
        %v1635 = vpop.f32.mrf.mxu0
        %v1636 = vadd.f32 0.0, %v1635
        %1637 = vdwg.mxu0
        %v1638 = vpack.c.bf16 %v1622, %v1620
        %v1639 = vpack.c.bf16 %v1636, %v1634
        %v1640 = vld [vmem:[#allocation14] sm:$0xff]
        %v1641 = vld [vmem:[#allocation14 + $0x8] sm:$0xff]
        %v1642 = vld [vmem:[#allocation14 + $0x10] sm:$0xff]
        %v1643 = vld [vmem:[#allocation14 + $0x18] sm:$0xff]
        %v1644 = vld [vmem:[#allocation14 + $0x20] sm:$0xff]
        %v1645 = vld [vmem:[#allocation14 + $0x28] sm:$0xff]
        %v1646 = vld [vmem:[#allocation14 + $0x30] sm:$0xff]
        %v1647 = vld [vmem:[#allocation14 + $0x38] sm:$0xff]
        %v1648 = vld [vmem:[#allocation14 + $0x40] sm:$0xff]
        %v1649 = vld [vmem:[#allocation14 + $0x48] sm:$0xff]
        %v1650 = vld [vmem:[#allocation14 + $0x50] sm:$0xff]
        %v1651 = vld [vmem:[#allocation14 + $0x58] sm:$0xff]
        %v1652 = vld [vmem:[#allocation14 + $0x60] sm:$0xff]
        %v1653 = vld [vmem:[#allocation14 + $0x68] sm:$0xff]
        %v1654 = vld [vmem:[#allocation14 + $0x70] sm:$0xff]
        %v1655 = vld [vmem:[#allocation14 + $0x78] sm:$0xff]
        %v1656 = vld [vmem:[#allocation14 + $0x80] sm:$0xff]
        %v1657 = vld [vmem:[#allocation14 + $0x88] sm:$0xff]
        %v1658 = vld [vmem:[#allocation14 + $0x90] sm:$0xff]
        %v1659 = vld [vmem:[#allocation14 + $0x98] sm:$0xff]
        %v1660 = vld [vmem:[#allocation14 + $0xa0] sm:$0xff]
        %v1661 = vld [vmem:[#allocation14 + $0xa8] sm:$0xff]
        %v1662 = vld [vmem:[#allocation14 + $0xb0] sm:$0xff]
        %v1663 = vld [vmem:[#allocation14 + $0xb8] sm:$0xff]
        %v1664 = vld [vmem:[#allocation14 + $0xc0] sm:$0xff]
        %v1665 = vld [vmem:[#allocation14 + $0xc8] sm:$0xff]
        %v1666 = vld [vmem:[#allocation14 + $0xd0] sm:$0xff]
        %v1667 = vld [vmem:[#allocation14 + $0xd8] sm:$0xff]
        %v1668 = vld [vmem:[#allocation14 + $0xe0] sm:$0xff]
        %v1669 = vld [vmem:[#allocation14 + $0xe8] sm:$0xff]
        %v1670 = vld [vmem:[#allocation14 + $0xf0] sm:$0xff]
        %v1671 = vld [vmem:[#allocation14 + $0xf8] sm:$0xff]
        %s1672 = scalar_lea.vmem [#allocation14], 256
        %v1673 = vld [vmem:[%s1672] sm:$0xff]
        %v1674 = vld [vmem:[%s1672 + $0x8] sm:$0xff]
        %v1675 = vld [vmem:[%s1672 + $0x10] sm:$0xff]
        %v1676 = vld [vmem:[%s1672 + $0x18] sm:$0xff]
        %v1677 = vld [vmem:[%s1672 + $0x20] sm:$0xff]
        %v1678 = vld [vmem:[%s1672 + $0x28] sm:$0xff]
        %v1679 = vld [vmem:[%s1672 + $0x30] sm:$0xff]
        %v1680 = vld [vmem:[%s1672 + $0x38] sm:$0xff]
        %v1681 = vld [vmem:[%s1672 + $0x40] sm:$0xff]
        %v1682 = vld [vmem:[%s1672 + $0x48] sm:$0xff]
        %v1683 = vld [vmem:[%s1672 + $0x50] sm:$0xff]
        %v1684 = vld [vmem:[%s1672 + $0x58] sm:$0xff]
        %v1685 = vld [vmem:[%s1672 + $0x60] sm:$0xff]
        %v1686 = vld [vmem:[%s1672 + $0x68] sm:$0xff]
        %v1687 = vld [vmem:[%s1672 + $0x70] sm:$0xff]
        %v1688 = vld [vmem:[%s1672 + $0x78] sm:$0xff]
        %v1689 = vld [vmem:[%s1672 + $0x80] sm:$0xff]
        %v1690 = vld [vmem:[%s1672 + $0x88] sm:$0xff]
        %v1691 = vld [vmem:[%s1672 + $0x90] sm:$0xff]
        %v1692 = vld [vmem:[%s1672 + $0x98] sm:$0xff]
        %v1693 = vld [vmem:[%s1672 + $0xa0] sm:$0xff]
        %v1694 = vld [vmem:[%s1672 + $0xa8] sm:$0xff]
        %v1695 = vld [vmem:[%s1672 + $0xb0] sm:$0xff]
        %v1696 = vld [vmem:[%s1672 + $0xb8] sm:$0xff]
        %v1697 = vld [vmem:[%s1672 + $0xc0] sm:$0xff]
        %v1698 = vld [vmem:[%s1672 + $0xc8] sm:$0xff]
        %v1699 = vld [vmem:[%s1672 + $0xd0] sm:$0xff]
        %v1700 = vld [vmem:[%s1672 + $0xd8] sm:$0xff]
        %v1701 = vld [vmem:[%s1672 + $0xe0] sm:$0xff]
        %v1702 = vld [vmem:[%s1672 + $0xe8] sm:$0xff]
        %v1703 = vld [vmem:[%s1672 + $0xf0] sm:$0xff]
        %v1704 = vld [vmem:[%s1672 + $0xf8] sm:$0xff]
        %v1737 = vunpack.c.l.b16 %v1673
        %v1738 = vunpack.c.h.b16 %v1673
        %v1739 = vunpack.c.l.b16 %v1674
        %v1740 = vunpack.c.h.b16 %v1674
        %v1741 = vunpack.c.l.b16 %v1675
        %v1742 = vunpack.c.h.b16 %v1675
        %v1743 = vunpack.c.l.b16 %v1676
        %v1744 = vunpack.c.h.b16 %v1676
        %v1745 = vunpack.c.l.b16 %v1677
        %v1746 = vunpack.c.h.b16 %v1677
        %v1747 = vunpack.c.l.b16 %v1678
        %v1748 = vunpack.c.h.b16 %v1678
        %v1749 = vunpack.c.l.b16 %v1679
        %v1750 = vunpack.c.h.b16 %v1679
        %v1751 = vunpack.c.l.b16 %v1680
        %v1752 = vunpack.c.h.b16 %v1680
        %v1753 = vunpack.c.l.b16 %v1681
        %v1754 = vunpack.c.h.b16 %v1681
        %v1755 = vunpack.c.l.b16 %v1682
        %v1756 = vunpack.c.h.b16 %v1682
        %v1757 = vunpack.c.l.b16 %v1683
        %v1758 = vunpack.c.h.b16 %v1683
        %v1759 = vunpack.c.l.b16 %v1684
        %v1760 = vunpack.c.h.b16 %v1684
        %v1761 = vunpack.c.l.b16 %v1685
        %v1762 = vunpack.c.h.b16 %v1685
        %v1763 = vunpack.c.l.b16 %v1686
        %v1764 = vunpack.c.h.b16 %v1686
        %v1765 = vunpack.c.l.b16 %v1687
        %v1766 = vunpack.c.h.b16 %v1687
        %v1767 = vunpack.c.l.b16 %v1688
        %v1768 = vunpack.c.h.b16 %v1688
        %v1769 = vunpack.c.l.b16 %v1689
        %v1770 = vunpack.c.h.b16 %v1689
        %v1771 = vunpack.c.l.b16 %v1690
        %v1772 = vunpack.c.h.b16 %v1690
        %v1773 = vunpack.c.l.b16 %v1691
        %v1774 = vunpack.c.h.b16 %v1691
        %v1775 = vunpack.c.l.b16 %v1692
        %v1776 = vunpack.c.h.b16 %v1692
        %v1777 = vunpack.c.l.b16 %v1693
        %v1778 = vunpack.c.h.b16 %v1693
        %v1779 = vunpack.c.l.b16 %v1694
        %v1780 = vunpack.c.h.b16 %v1694
        %v1781 = vunpack.c.l.b16 %v1695
        %v1782 = vunpack.c.h.b16 %v1695
        %v1783 = vunpack.c.l.b16 %v1696
        %v1784 = vunpack.c.h.b16 %v1696
        %v1785 = vunpack.c.l.b16 %v1697
        %v1786 = vunpack.c.h.b16 %v1697
        %v1787 = vunpack.c.l.b16 %v1698
        %v1788 = vunpack.c.h.b16 %v1698
        %v1789 = vunpack.c.l.b16 %v1699
        %v1790 = vunpack.c.h.b16 %v1699
        %v1791 = vunpack.c.l.b16 %v1700
        %v1792 = vunpack.c.h.b16 %v1700
        %v1793 = vunpack.c.l.b16 %v1701
        %v1794 = vunpack.c.h.b16 %v1701
        %v1795 = vunpack.c.l.b16 %v1702
        %v1796 = vunpack.c.h.b16 %v1702
        %v1797 = vunpack.c.l.b16 %v1703
        %v1798 = vunpack.c.h.b16 %v1703
        %v1799 = vunpack.c.l.b16 %v1704
        %v1800 = vunpack.c.h.b16 %v1704
        %v1801 = vpack.c.b16 %v1739, %v1737
        %v1802 = vpack.c.b16 %v1740, %v1738
        %v1803 = vpack.c.b16 %v1743, %v1741
        %v1804 = vpack.c.b16 %v1744, %v1742
        %v1805 = vpack.c.b16 %v1747, %v1745
        %v1806 = vpack.c.b16 %v1748, %v1746
        %v1807 = vpack.c.b16 %v1751, %v1749
        %v1808 = vpack.c.b16 %v1752, %v1750
        %v1809 = vpack.c.b16 %v1755, %v1753
        %v1810 = vpack.c.b16 %v1756, %v1754
        %v1811 = vpack.c.b16 %v1759, %v1757
        %v1812 = vpack.c.b16 %v1760, %v1758
        %v1813 = vpack.c.b16 %v1763, %v1761
        %v1814 = vpack.c.b16 %v1764, %v1762
        %v1815 = vpack.c.b16 %v1767, %v1765
        %v1816 = vpack.c.b16 %v1768, %v1766
        %v1817 = vpack.c.b16 %v1771, %v1769
        %v1818 = vpack.c.b16 %v1772, %v1770
        %v1819 = vpack.c.b16 %v1775, %v1773
        %v1820 = vpack.c.b16 %v1776, %v1774
        %v1821 = vpack.c.b16 %v1779, %v1777
        %v1822 = vpack.c.b16 %v1780, %v1778
        %v1823 = vpack.c.b16 %v1783, %v1781
        %v1824 = vpack.c.b16 %v1784, %v1782
        %v1825 = vpack.c.b16 %v1787, %v1785
        %v1826 = vpack.c.b16 %v1788, %v1786
        %v1827 = vpack.c.b16 %v1791, %v1789
        %v1828 = vpack.c.b16 %v1792, %v1790
        %v1829 = vpack.c.b16 %v1795, %v1793
        %v1830 = vpack.c.b16 %v1796, %v1794
        %v1831 = vpack.c.b16 %v1799, %v1797
        %v1832 = vpack.c.b16 %v1800, %v1798
        %1865 = vmatpush.bf16.msra.mxu0 %v1815
        %1866 = vmatpush.bf16.msra.mxu0 %v1813
        %1867 = vmatpush.bf16.msra.mxu0 %v1811
        %1868 = vmatpush.bf16.msra.mxu0 %v1809
        %1869 = vmatpush.bf16.msra.mxu0 %v1807
        %1870 = vmatpush.bf16.msra.mxu0 %v1805
        %1871 = vmatpush.bf16.msra.mxu0 %v1803
        %1872 = vmatpush.bf16.msra.mxu0 %v1801
        %1873 = vmatmul.bf16.gmra.mxu0 %v1638
        %v1874 = vpop.f32.mrf.mxu0
        %v1875 = vadd.f32 0.0, %v1874
        %v1876 = vpop.f32.mrf.mxu0
        %v1877 = vadd.f32 0.0, %v1876
        %1878 = vdwg.mxu0
        %1879 = vmatpush.bf16.msra.mxu0 %v1831
        %1880 = vmatpush.bf16.msra.mxu0 %v1829
        %1881 = vmatpush.bf16.msra.mxu0 %v1827
        %1882 = vmatpush.bf16.msra.mxu0 %v1825
        %1883 = vmatpush.bf16.msra.mxu0 %v1823
        %1884 = vmatpush.bf16.msra.mxu0 %v1821
        %1885 = vmatpush.bf16.msra.mxu0 %v1819
        %1886 = vmatpush.bf16.msra.mxu0 %v1817
        %1887 = vmatmul.bf16.gmra.mxu0 %v1639
        %v1888 = vpop.f32.mrf.mxu0
        %v1889 = vadd.f32 %v1875, %v1888
        %v1890 = vpop.f32.mrf.mxu0
        %v1891 = vadd.f32 %v1877, %v1890
        %1892 = vdwg.mxu0
        %1893 = vmatpush.bf16.msra.mxu0 %v1816
        %1894 = vmatpush.bf16.msra.mxu0 %v1814
        %1895 = vmatpush.bf16.msra.mxu0 %v1812
        %1896 = vmatpush.bf16.msra.mxu0 %v1810
        %1897 = vmatpush.bf16.msra.mxu0 %v1808
        %1898 = vmatpush.bf16.msra.mxu0 %v1806
        %1899 = vmatpush.bf16.msra.mxu0 %v1804
        %1900 = vmatpush.bf16.msra.mxu0 %v1802
        %1901 = vmatmul.bf16.gmra.mxu0 %v1638
        %v1902 = vpop.f32.mrf.mxu0
        %v1903 = vadd.f32 0.0, %v1902
        %v1904 = vpop.f32.mrf.mxu0
        %v1905 = vadd.f32 0.0, %v1904
        %1906 = vdwg.mxu0
        %1907 = vmatpush.bf16.msra.mxu0 %v1832
        %1908 = vmatpush.bf16.msra.mxu0 %v1830
        %1909 = vmatpush.bf16.msra.mxu0 %v1828
        %1910 = vmatpush.bf16.msra.mxu0 %v1826
        %1911 = vmatpush.bf16.msra.mxu0 %v1824
        %1912 = vmatpush.bf16.msra.mxu0 %v1822
        %1913 = vmatpush.bf16.msra.mxu0 %v1820
        %1914 = vmatpush.bf16.msra.mxu0 %v1818
        %1915 = vmatmul.bf16.gmra.mxu0 %v1639
        %v1916 = vpop.f32.mrf.mxu0
        %v1917 = vadd.f32 %v1903, %v1916
        %v1918 = vpop.f32.mrf.mxu0
        %v1919 = vadd.f32 %v1905, %v1918
        %1920 = vdwg.mxu0
        %v1953 = vunpack.c.l.b16 %v1640
        %v1954 = vunpack.c.h.b16 %v1640
        %v1955 = vunpack.c.l.b16 %v1641
        %v1956 = vunpack.c.h.b16 %v1641
        %v1957 = vunpack.c.l.b16 %v1642
        %v1958 = vunpack.c.h.b16 %v1642
        %v1959 = vunpack.c.l.b16 %v1643
        %v1960 = vunpack.c.h.b16 %v1643
        %v1961 = vunpack.c.l.b16 %v1644
        %v1962 = vunpack.c.h.b16 %v1644
        %v1963 = vunpack.c.l.b16 %v1645
        %v1964 = vunpack.c.h.b16 %v1645
        %v1965 = vunpack.c.l.b16 %v1646
        %v1966 = vunpack.c.h.b16 %v1646
        %v1967 = vunpack.c.l.b16 %v1647
        %v1968 = vunpack.c.h.b16 %v1647
        %v1969 = vunpack.c.l.b16 %v1648
        %v1970 = vunpack.c.h.b16 %v1648
        %v1971 = vunpack.c.l.b16 %v1649
        %v1972 = vunpack.c.h.b16 %v1649
        %v1973 = vunpack.c.l.b16 %v1650
        %v1974 = vunpack.c.h.b16 %v1650
        %v1975 = vunpack.c.l.b16 %v1651
        %v1976 = vunpack.c.h.b16 %v1651
        %v1977 = vunpack.c.l.b16 %v1652
        %v1978 = vunpack.c.h.b16 %v1652
        %v1979 = vunpack.c.l.b16 %v1653
        %v1980 = vunpack.c.h.b16 %v1653
        %v1981 = vunpack.c.l.b16 %v1654
        %v1982 = vunpack.c.h.b16 %v1654
        %v1983 = vunpack.c.l.b16 %v1655
        %v1984 = vunpack.c.h.b16 %v1655
        %v1985 = vunpack.c.l.b16 %v1656
        %v1986 = vunpack.c.h.b16 %v1656
        %v1987 = vunpack.c.l.b16 %v1657
        %v1988 = vunpack.c.h.b16 %v1657
        %v1989 = vunpack.c.l.b16 %v1658
        %v1990 = vunpack.c.h.b16 %v1658
        %v1991 = vunpack.c.l.b16 %v1659
        %v1992 = vunpack.c.h.b16 %v1659
        %v1993 = vunpack.c.l.b16 %v1660
        %v1994 = vunpack.c.h.b16 %v1660
        %v1995 = vunpack.c.l.b16 %v1661
        %v1996 = vunpack.c.h.b16 %v1661
        %v1997 = vunpack.c.l.b16 %v1662
        %v1998 = vunpack.c.h.b16 %v1662
        %v1999 = vunpack.c.l.b16 %v1663
        %v2000 = vunpack.c.h.b16 %v1663
        %v2001 = vunpack.c.l.b16 %v1664
        %v2002 = vunpack.c.h.b16 %v1664
        %v2003 = vunpack.c.l.b16 %v1665
        %v2004 = vunpack.c.h.b16 %v1665
        %v2005 = vunpack.c.l.b16 %v1666
        %v2006 = vunpack.c.h.b16 %v1666
        %v2007 = vunpack.c.l.b16 %v1667
        %v2008 = vunpack.c.h.b16 %v1667
        %v2009 = vunpack.c.l.b16 %v1668
        %v2010 = vunpack.c.h.b16 %v1668
        %v2011 = vunpack.c.l.b16 %v1669
        %v2012 = vunpack.c.h.b16 %v1669
        %v2013 = vunpack.c.l.b16 %v1670
        %v2014 = vunpack.c.h.b16 %v1670
        %v2015 = vunpack.c.l.b16 %v1671
        %v2016 = vunpack.c.h.b16 %v1671
        %v2017 = vpack.c.b16 %v1955, %v1953
        %v2018 = vpack.c.b16 %v1956, %v1954
        %v2019 = vpack.c.b16 %v1959, %v1957
        %v2020 = vpack.c.b16 %v1960, %v1958
        %v2021 = vpack.c.b16 %v1963, %v1961
        %v2022 = vpack.c.b16 %v1964, %v1962
        %v2023 = vpack.c.b16 %v1967, %v1965
        %v2024 = vpack.c.b16 %v1968, %v1966
        %v2025 = vpack.c.b16 %v1971, %v1969
        %v2026 = vpack.c.b16 %v1972, %v1970
        %v2027 = vpack.c.b16 %v1975, %v1973
        %v2028 = vpack.c.b16 %v1976, %v1974
        %v2029 = vpack.c.b16 %v1979, %v1977
        %v2030 = vpack.c.b16 %v1980, %v1978
        %v2031 = vpack.c.b16 %v1983, %v1981
        %v2032 = vpack.c.b16 %v1984, %v1982
        %v2033 = vpack.c.b16 %v1987, %v1985
        %v2034 = vpack.c.b16 %v1988, %v1986
        %v2035 = vpack.c.b16 %v1991, %v1989
        %v2036 = vpack.c.b16 %v1992, %v1990
        %v2037 = vpack.c.b16 %v1995, %v1993
        %v2038 = vpack.c.b16 %v1996, %v1994
        %v2039 = vpack.c.b16 %v1999, %v1997
        %v2040 = vpack.c.b16 %v2000, %v1998
        %v2041 = vpack.c.b16 %v2003, %v2001
        %v2042 = vpack.c.b16 %v2004, %v2002
        %v2043 = vpack.c.b16 %v2007, %v2005
        %v2044 = vpack.c.b16 %v2008, %v2006
        %v2045 = vpack.c.b16 %v2011, %v2009
        %v2046 = vpack.c.b16 %v2012, %v2010
        %v2047 = vpack.c.b16 %v2015, %v2013
        %v2048 = vpack.c.b16 %v2016, %v2014
        %2081 = vmatpush.bf16.msra.mxu0 %v2031
        %2082 = vmatpush.bf16.msra.mxu0 %v2029
        %2083 = vmatpush.bf16.msra.mxu0 %v2027
        %2084 = vmatpush.bf16.msra.mxu0 %v2025
        %2085 = vmatpush.bf16.msra.mxu0 %v2023
        %2086 = vmatpush.bf16.msra.mxu0 %v2021
        %2087 = vmatpush.bf16.msra.mxu0 %v2019
        %2088 = vmatpush.bf16.msra.mxu0 %v2017
        %2089 = vmatmul.bf16.gmra.mxu0 %v1608
        %v2090 = vpop.f32.mrf.mxu0
        %v2091 = vadd.f32 %v1889, %v2090
        %v2092 = vpop.f32.mrf.mxu0
        %v2093 = vadd.f32 %v1891, %v2092
        %2094 = vdwg.mxu0
        %2095 = vmatpush.bf16.msra.mxu0 %v2047
        %2096 = vmatpush.bf16.msra.mxu0 %v2045
        %2097 = vmatpush.bf16.msra.mxu0 %v2043
        %2098 = vmatpush.bf16.msra.mxu0 %v2041
        %2099 = vmatpush.bf16.msra.mxu0 %v2039
        %2100 = vmatpush.bf16.msra.mxu0 %v2037
        %2101 = vmatpush.bf16.msra.mxu0 %v2035
        %2102 = vmatpush.bf16.msra.mxu0 %v2033
        %2103 = vmatmul.bf16.gmra.mxu0 %v1609
        %v2104 = vpop.f32.mrf.mxu0
        %v2105 = vadd.f32 %v2091, %v2104
        %v2106 = vpop.f32.mrf.mxu0
        %v2107 = vadd.f32 %v2093, %v2106
        %2108 = vdwg.mxu0
        %2109 = vmatpush.bf16.msra.mxu0 %v2032
        %2110 = vmatpush.bf16.msra.mxu0 %v2030
        %2111 = vmatpush.bf16.msra.mxu0 %v2028
        %2112 = vmatpush.bf16.msra.mxu0 %v2026
        %2113 = vmatpush.bf16.msra.mxu0 %v2024
        %2114 = vmatpush.bf16.msra.mxu0 %v2022
        %2115 = vmatpush.bf16.msra.mxu0 %v2020
        %2116 = vmatpush.bf16.msra.mxu0 %v2018
        %2117 = vmatmul.bf16.gmra.mxu0 %v1608
        %v2118 = vpop.f32.mrf.mxu0
        %v2119 = vadd.f32 %v1917, %v2118
        %v2120 = vpop.f32.mrf.mxu0
        %v2121 = vadd.f32 %v1919, %v2120
        %2122 = vdwg.mxu0
        %2123 = vmatpush.bf16.msra.mxu0 %v2048
        %2124 = vmatpush.bf16.msra.mxu0 %v2046
        %2125 = vmatpush.bf16.msra.mxu0 %v2044
        %2126 = vmatpush.bf16.msra.mxu0 %v2042
        %2127 = vmatpush.bf16.msra.mxu0 %v2040
        %2128 = vmatpush.bf16.msra.mxu0 %v2038
        %2129 = vmatpush.bf16.msra.mxu0 %v2036
        %2130 = vmatpush.bf16.msra.mxu0 %v2034
        %2131 = vmatmul.bf16.gmra.mxu0 %v1609
        %v2132 = vpop.f32.mrf.mxu0
        %v2133 = vadd.f32 %v2119, %v2132
        %v2134 = vpop.f32.mrf.mxu0
        %v2135 = vadd.f32 %v2121, %v2134
        %2136 = vdwg.mxu0
        %v2137 = vld [vmem:[%s11] sm:$0x3]
        %v2139 = vperm.slane %v2137, 0
        %v2140 = vperm.slane %v2137, 1
        %v2143 = vadd.f32 %v2105, %v2139
        %v2144 = vadd.f32 %v2133, %v2140
        %v2145 = vadd.f32 %v2107, %v2139
        %v2146 = vadd.f32 %v2135, %v2140
        %v2147 = vmul.f32 %v2143, 0.01
        %v2148 = vmul.f32 %v2144, 0.01
        %v2149 = vmul.f32 %v2145, 0.01
        %v2150 = vmul.f32 %v2146, 0.01
        %v2151 = vmax.f32 %v2143, %v2147
        %v2152 = vmax.f32 %v2144, %v2148
        %v2153 = vmax.f32 %v2145, %v2149
        %v2154 = vmax.f32 %v2146, %v2150
        %vm2155 = vcmp.le.s32.totalorder %v1025, 7
        %vm2156 = vcmp.le.s32.totalorder %v1026, 7
        %vm2157 = vmand %vm1027, %vm2155
        %vm2158 = vmand %vm1028, %vm2156
        %v2159 = vsel %vm2157, %v2151, 0.0
        %v2160 = vsel %vm2157, %v2152, 0.0
        %v2161 = vsel %vm2158, %v2153, 0.0
        %v2162 = vsel %vm2158, %v2154, 0.0
        %v2163 = vld [vmem:[%s608] sm:$0xff]
        %v2164 = vld [vmem:[%s608 + $0x8] sm:$0xff]
        %v2165 = vld [vmem:[%s608 + $0x10] sm:$0xff]
        %v2166 = vld [vmem:[%s608 + $0x18] sm:$0xff]
        %v2167 = vadd.f32 %v2159, %v2163
        %v2168 = vadd.f32 %v2160, %v2164
        %v2169 = vadd.f32 %v2161, %v2165
        %v2170 = vadd.f32 %v2162, %v2166
        %v2171 = vpack.c.bf16 %v2169, %v2167
        %v2172 = vpack.c.bf16 %v2170, %v2168
        %2173 = vmatpush.bf16.msra.mxu0 0
        %2174 = vmatpush.bf16.msra.mxu0 0
        %2175 = vmatpush.bf16.msra.mxu0 0
        %2176 = vmatpush.bf16.msra.mxu0 0
        %2177 = vmatpush.bf16.msra.mxu0 0
        %2178 = vmatpush.bf16.msra.mxu0 0
        %2179 = vmatpush.bf16.msra.mxu0 0
        %2180 = vmatpush.bf16.msra.mxu0 %v2171
        %2181 = vmatmul.bf16.gmra.mxu0 %v719
        %v2182 = vpop.f32.mrf.mxu0
        %v2183 = vadd.f32 0.0, %v2182
        %v2184 = vpop.f32.mrf.mxu0
        %v2185 = vadd.f32 0.0, %v2184
        %2186 = vdwg.mxu0
        %2187 = vmatpush.bf16.msra.mxu0 0
        %2188 = vmatpush.bf16.msra.mxu0 0
        %2189 = vmatpush.bf16.msra.mxu0 0
        %2190 = vmatpush.bf16.msra.mxu0 0
        %2191 = vmatpush.bf16.msra.mxu0 0
        %2192 = vmatpush.bf16.msra.mxu0 0
        %2193 = vmatpush.bf16.msra.mxu0 0
        %2194 = vmatpush.bf16.msra.mxu0 %v2172
        %2195 = vmatmul.bf16.gmra.mxu0 %v719
        %v2196 = vpop.f32.mrf.mxu0
        %v2197 = vadd.f32 0.0, %v2196
        %v2198 = vpop.f32.mrf.mxu0
        %v2199 = vadd.f32 0.0, %v2198
        %2200 = vdwg.mxu0
        %v2201 = vpack.c.bf16 %v2185, %v2183
        %v2202 = vpack.c.bf16 %v2199, %v2197
        %v2203 = vld [vmem:[#allocation16] sm:$0xf]
        %v2204 = vld [vmem:[#allocation16 + $0x4] sm:$0xf]
        %v2205 = vld [vmem:[#allocation16 + $0x8] sm:$0xf]
        %v2206 = vld [vmem:[#allocation16 + $0xc] sm:$0xf]
        %v2207 = vld [vmem:[#allocation16 + $0x10] sm:$0xf]
        %v2208 = vld [vmem:[#allocation16 + $0x14] sm:$0xf]
        %v2209 = vld [vmem:[#allocation16 + $0x18] sm:$0xf]
        %v2210 = vld [vmem:[#allocation16 + $0x1c] sm:$0xf]
        %v2211 = vld [vmem:[#allocation16 + $0x20] sm:$0xf]
        %v2212 = vld [vmem:[#allocation16 + $0x24] sm:$0xf]
        %v2213 = vld [vmem:[#allocation16 + $0x28] sm:$0xf]
        %v2214 = vld [vmem:[#allocation16 + $0x2c] sm:$0xf]
        %v2215 = vld [vmem:[#allocation16 + $0x30] sm:$0xf]
        %v2216 = vld [vmem:[#allocation16 + $0x34] sm:$0xf]
        %v2217 = vld [vmem:[#allocation16 + $0x38] sm:$0xf]
        %v2218 = vld [vmem:[#allocation16 + $0x3c] sm:$0xf]
        %v2219 = vld [vmem:[#allocation16 + $0x40] sm:$0xf]
        %v2220 = vld [vmem:[#allocation16 + $0x44] sm:$0xf]
        %v2221 = vld [vmem:[#allocation16 + $0x48] sm:$0xf]
        %v2222 = vld [vmem:[#allocation16 + $0x4c] sm:$0xf]
        %v2223 = vld [vmem:[#allocation16 + $0x50] sm:$0xf]
        %v2224 = vld [vmem:[#allocation16 + $0x54] sm:$0xf]
        %v2225 = vld [vmem:[#allocation16 + $0x58] sm:$0xf]
        %v2226 = vld [vmem:[#allocation16 + $0x5c] sm:$0xf]
        %v2227 = vld [vmem:[#allocation16 + $0x60] sm:$0xf]
        %v2228 = vld [vmem:[#allocation16 + $0x64] sm:$0xf]
        %v2229 = vld [vmem:[#allocation16 + $0x68] sm:$0xf]
        %v2230 = vld [vmem:[#allocation16 + $0x6c] sm:$0xf]
        %v2231 = vld [vmem:[#allocation16 + $0x70] sm:$0xf]
        %v2232 = vld [vmem:[#allocation16 + $0x74] sm:$0xf]
        %v2233 = vld [vmem:[#allocation16 + $0x78] sm:$0xf]
        %v2234 = vld [vmem:[#allocation16 + $0x7c] sm:$0xf]
        %s2235 = scalar_lea.vmem [#allocation16], 128
        %v2236 = vld [vmem:[%s2235] sm:$0xf]
        %v2237 = vld [vmem:[%s2235 + $0x4] sm:$0xf]
        %v2238 = vld [vmem:[%s2235 + $0x8] sm:$0xf]
        %v2239 = vld [vmem:[%s2235 + $0xc] sm:$0xf]
        %v2240 = vld [vmem:[%s2235 + $0x10] sm:$0xf]
        %v2241 = vld [vmem:[%s2235 + $0x14] sm:$0xf]
        %v2242 = vld [vmem:[%s2235 + $0x18] sm:$0xf]
        %v2243 = vld [vmem:[%s2235 + $0x1c] sm:$0xf]
        %v2244 = vld [vmem:[%s2235 + $0x20] sm:$0xf]
        %v2245 = vld [vmem:[%s2235 + $0x24] sm:$0xf]
        %v2246 = vld [vmem:[%s2235 + $0x28] sm:$0xf]
        %v2247 = vld [vmem:[%s2235 + $0x2c] sm:$0xf]
        %v2248 = vld [vmem:[%s2235 + $0x30] sm:$0xf]
        %v2249 = vld [vmem:[%s2235 + $0x34] sm:$0xf]
        %v2250 = vld [vmem:[%s2235 + $0x38] sm:$0xf]
        %v2251 = vld [vmem:[%s2235 + $0x3c] sm:$0xf]
        %v2252 = vld [vmem:[%s2235 + $0x40] sm:$0xf]
        %v2253 = vld [vmem:[%s2235 + $0x44] sm:$0xf]
        %v2254 = vld [vmem:[%s2235 + $0x48] sm:$0xf]
        %v2255 = vld [vmem:[%s2235 + $0x4c] sm:$0xf]
        %v2256 = vld [vmem:[%s2235 + $0x50] sm:$0xf]
        %v2257 = vld [vmem:[%s2235 + $0x54] sm:$0xf]
        %v2258 = vld [vmem:[%s2235 + $0x58] sm:$0xf]
        %v2259 = vld [vmem:[%s2235 + $0x5c] sm:$0xf]
        %v2260 = vld [vmem:[%s2235 + $0x60] sm:$0xf]
        %v2261 = vld [vmem:[%s2235 + $0x64] sm:$0xf]
        %v2262 = vld [vmem:[%s2235 + $0x68] sm:$0xf]
        %v2263 = vld [vmem:[%s2235 + $0x6c] sm:$0xf]
        %v2264 = vld [vmem:[%s2235 + $0x70] sm:$0xf]
        %v2265 = vld [vmem:[%s2235 + $0x74] sm:$0xf]
        %v2266 = vld [vmem:[%s2235 + $0x78] sm:$0xf]
        %v2267 = vld [vmem:[%s2235 + $0x7c] sm:$0xf]
        %v2300 = vunpack.c.l.b16 %v2236
        %v2301 = vunpack.c.l.b16 %v2237
        %v2302 = vunpack.c.l.b16 %v2238
        %v2303 = vunpack.c.l.b16 %v2239
        %v2304 = vunpack.c.l.b16 %v2240
        %v2305 = vunpack.c.l.b16 %v2241
        %v2306 = vunpack.c.l.b16 %v2242
        %v2307 = vunpack.c.l.b16 %v2243
        %v2308 = vunpack.c.l.b16 %v2244
        %v2309 = vunpack.c.l.b16 %v2245
        %v2310 = vunpack.c.l.b16 %v2246
        %v2311 = vunpack.c.l.b16 %v2247
        %v2312 = vunpack.c.l.b16 %v2248
        %v2313 = vunpack.c.l.b16 %v2249
        %v2314 = vunpack.c.l.b16 %v2250
        %v2315 = vunpack.c.l.b16 %v2251
        %v2316 = vunpack.c.l.b16 %v2252
        %v2317 = vunpack.c.l.b16 %v2253
        %v2318 = vunpack.c.l.b16 %v2254
        %v2319 = vunpack.c.l.b16 %v2255
        %v2320 = vunpack.c.l.b16 %v2256
        %v2321 = vunpack.c.l.b16 %v2257
        %v2322 = vunpack.c.l.b16 %v2258
        %v2323 = vunpack.c.l.b16 %v2259
        %v2324 = vunpack.c.l.b16 %v2260
        %v2325 = vunpack.c.l.b16 %v2261
        %v2326 = vunpack.c.l.b16 %v2262
        %v2327 = vunpack.c.l.b16 %v2263
        %v2328 = vunpack.c.l.b16 %v2264
        %v2329 = vunpack.c.l.b16 %v2265
        %v2330 = vunpack.c.l.b16 %v2266
        %v2331 = vunpack.c.l.b16 %v2267
        %v2332 = vpack.c.b16 %v2301, %v2300
        %v2333 = vpack.c.b16 %v2303, %v2302
        %v2334 = vpack.c.b16 %v2305, %v2304
        %v2335 = vpack.c.b16 %v2307, %v2306
        %v2336 = vpack.c.b16 %v2309, %v2308
        %v2337 = vpack.c.b16 %v2311, %v2310
        %v2338 = vpack.c.b16 %v2313, %v2312
        %v2339 = vpack.c.b16 %v2315, %v2314
        %v2340 = vpack.c.b16 %v2317, %v2316
        %v2341 = vpack.c.b16 %v2319, %v2318
        %v2342 = vpack.c.b16 %v2321, %v2320
        %v2343 = vpack.c.b16 %v2323, %v2322
        %v2344 = vpack.c.b16 %v2325, %v2324
        %v2345 = vpack.c.b16 %v2327, %v2326
        %v2346 = vpack.c.b16 %v2329, %v2328
        %v2347 = vpack.c.b16 %v2331, %v2330
        %2364 = vmatpush.bf16.msra.mxu0 %v2339
        %2365 = vmatpush.bf16.msra.mxu0 %v2338
        %2366 = vmatpush.bf16.msra.mxu0 %v2337
        %2367 = vmatpush.bf16.msra.mxu0 %v2336
        %2368 = vmatpush.bf16.msra.mxu0 %v2335
        %2369 = vmatpush.bf16.msra.mxu0 %v2334
        %2370 = vmatpush.bf16.msra.mxu0 %v2333
        %2371 = vmatpush.bf16.msra.mxu0 %v2332
        %2372 = vmatmul.bf16.gmra.mxu0 %v2201
        %v2373 = vpop.f32.mrf.mxu0
        %v2374 = vadd.f32 0.0, %v2373
        %v2375 = vpop.f32.mrf.mxu0
        %v2376 = vadd.f32 0.0, %v2375
        %2377 = vdwg.mxu0
        %2378 = vmatpush.bf16.msra.mxu0 %v2347
        %2379 = vmatpush.bf16.msra.mxu0 %v2346
        %2380 = vmatpush.bf16.msra.mxu0 %v2345
        %2381 = vmatpush.bf16.msra.mxu0 %v2344
        %2382 = vmatpush.bf16.msra.mxu0 %v2343
        %2383 = vmatpush.bf16.msra.mxu0 %v2342
        %2384 = vmatpush.bf16.msra.mxu0 %v2341
        %2385 = vmatpush.bf16.msra.mxu0 %v2340
        %2386 = vmatmul.bf16.gmra.mxu0 %v2202
        %v2387 = vpop.f32.mrf.mxu0
        %v2388 = vadd.f32 %v2374, %v2387
        %v2389 = vpop.f32.mrf.mxu0
        %v2390 = vadd.f32 %v2376, %v2389
        %2391 = vdwg.mxu0
        %v2424 = vunpack.c.l.b16 %v2203
        %v2425 = vunpack.c.l.b16 %v2204
        %v2426 = vunpack.c.l.b16 %v2205
        %v2427 = vunpack.c.l.b16 %v2206
        %v2428 = vunpack.c.l.b16 %v2207
        %v2429 = vunpack.c.l.b16 %v2208
        %v2430 = vunpack.c.l.b16 %v2209
        %v2431 = vunpack.c.l.b16 %v2210
        %v2432 = vunpack.c.l.b16 %v2211
        %v2433 = vunpack.c.l.b16 %v2212
        %v2434 = vunpack.c.l.b16 %v2213
        %v2435 = vunpack.c.l.b16 %v2214
        %v2436 = vunpack.c.l.b16 %v2215
        %v2437 = vunpack.c.l.b16 %v2216
        %v2438 = vunpack.c.l.b16 %v2217
        %v2439 = vunpack.c.l.b16 %v2218
        %v2440 = vunpack.c.l.b16 %v2219
        %v2441 = vunpack.c.l.b16 %v2220
        %v2442 = vunpack.c.l.b16 %v2221
        %v2443 = vunpack.c.l.b16 %v2222
        %v2444 = vunpack.c.l.b16 %v2223
        %v2445 = vunpack.c.l.b16 %v2224
        %v2446 = vunpack.c.l.b16 %v2225
        %v2447 = vunpack.c.l.b16 %v2226
        %v2448 = vunpack.c.l.b16 %v2227
        %v2449 = vunpack.c.l.b16 %v2228
        %v2450 = vunpack.c.l.b16 %v2229
        %v2451 = vunpack.c.l.b16 %v2230
        %v2452 = vunpack.c.l.b16 %v2231
        %v2453 = vunpack.c.l.b16 %v2232
        %v2454 = vunpack.c.l.b16 %v2233
        %v2455 = vunpack.c.l.b16 %v2234
        %v2456 = vpack.c.b16 %v2425, %v2424
        %v2457 = vpack.c.b16 %v2427, %v2426
        %v2458 = vpack.c.b16 %v2429, %v2428
        %v2459 = vpack.c.b16 %v2431, %v2430
        %v2460 = vpack.c.b16 %v2433, %v2432
        %v2461 = vpack.c.b16 %v2435, %v2434
        %v2462 = vpack.c.b16 %v2437, %v2436
        %v2463 = vpack.c.b16 %v2439, %v2438
        %v2464 = vpack.c.b16 %v2441, %v2440
        %v2465 = vpack.c.b16 %v2443, %v2442
        %v2466 = vpack.c.b16 %v2445, %v2444
        %v2467 = vpack.c.b16 %v2447, %v2446
        %v2468 = vpack.c.b16 %v2449, %v2448
        %v2469 = vpack.c.b16 %v2451, %v2450
        %v2470 = vpack.c.b16 %v2453, %v2452
        %v2471 = vpack.c.b16 %v2455, %v2454
        %2488 = vmatpush.bf16.msra.mxu0 %v2463
        %2489 = vmatpush.bf16.msra.mxu0 %v2462
        %2490 = vmatpush.bf16.msra.mxu0 %v2461
        %2491 = vmatpush.bf16.msra.mxu0 %v2460
        %2492 = vmatpush.bf16.msra.mxu0 %v2459
        %2493 = vmatpush.bf16.msra.mxu0 %v2458
        %2494 = vmatpush.bf16.msra.mxu0 %v2457
        %2495 = vmatpush.bf16.msra.mxu0 %v2456
        %2496 = vmatmul.bf16.gmra.mxu0 %v2171
        %v2497 = vpop.f32.mrf.mxu0
        %v2498 = vadd.f32 %v2388, %v2497
        %v2499 = vpop.f32.mrf.mxu0
        %v2500 = vadd.f32 %v2390, %v2499
        %2501 = vdwg.mxu0
        %2502 = vmatpush.bf16.msra.mxu0 %v2471
        %2503 = vmatpush.bf16.msra.mxu0 %v2470
        %2504 = vmatpush.bf16.msra.mxu0 %v2469
        %2505 = vmatpush.bf16.msra.mxu0 %v2468
        %2506 = vmatpush.bf16.msra.mxu0 %v2467
        %2507 = vmatpush.bf16.msra.mxu0 %v2466
        %2508 = vmatpush.bf16.msra.mxu0 %v2465
        %2509 = vmatpush.bf16.msra.mxu0 %v2464
        %2510 = vmatmul.bf16.gmra.mxu0 %v2172
        %v2511 = vpop.f32.mrf.mxu0
        %v2512 = vadd.f32 %v2498, %v2511
        %v2513 = vpop.f32.mrf.mxu0
        %v2514 = vadd.f32 %v2500, %v2513
        %2515 = vdwg.mxu0
        %v2516 = vld [vmem:[%s12] sm:$0x1]
        %v2518 = vperm.slane %v2516, 0
        %v2520 = vadd.f32 %v2512, %v2518
        %v2521 = vadd.f32 %v2514, %v2518
        %v2522 = vsub.f32 0.0, %v2520
        %v2523 = vsub.f32 0.0, %v2521
        %v2524 = vmul.f32 %v2522, 1.442695
        %v2525 = vpow.pop %v2524
        %v2526 = vmul.f32 %v2523, 1.442695
        %v2527 = vpow.pop %v2526
        %v2528 = vadd.f32 %v2525, 1.0
        %v2529 = vadd.f32 %v2527, 1.0
        %v2530 = vrcp.pop %v2528
        %v2531 = vrcp.pop %v2529
        %vm2532 = vcmp.le.s32.totalorder %v1025, 8
        %vm2533 = vcmp.le.s32.totalorder %v1026, 8
        %vm2534 = vmand %vm1027, %vm2532
        %vm2535 = vmand %vm1028, %vm2533
        %v2536 = vsel %vm2534, %v2530, 0.0
        %v2537 = vsel %vm2535, %v2531, 0.0
        %2538 = vst [vmem:[%s691] sm:$0xff] %v2536
        %2539 = vst [vmem:[%s691 + $0x8] sm:$0xff] %v2537
        %s2540 = sand.u32 %s344, 1
        %s2541 = scalar_lea.sflag [#allocation4], %s2540
        %s2542 = sand.u32 %s344, 1
        %s2543 = smul.addr %s2542, 16
        %s2544 = scalar_lea.vmem [#allocation17], %s2543
        // Predicated region
        $region109: #{tpu_custom_call.1} parent=71 // pred_check
          %p2545 = pneg %p354
        $region110: #{tpu_custom_call.1} parent=71 // pred_check_branch
          %2547 = sbr.rel (%p2545) target = $region112
        $region111: #{tpu_custom_call.1} parent=71 // pred_region
          %s2548 = smul.u32 2, %s38
          %2550 = vsyncadd %s2541, 0
          %s2551 = smul.addr %s2548, 8
          %s2552 = scalar_lea.hbm %s13, %s2551
          %s2553 = sshll.u32 %s2544, 4
          %s2554 = int_to_ptr.vmem [resolvable:$true] %s2553
          %s2555 = sshll.u32 %s2552, 4
          %s2556 = int_to_ptr.hbm [resolvable:$true] %s2555
          %2561 = dma.vmem_to_hbm [thread:$0]  %s2554, 256, %s2556, %s2541, 128, 128, 8
        $region112: #{tpu_custom_call.1} parent=71 // pred_fallthru
          _
      $region72: #{tpu_custom_call.1} parent=5 // pred_fallthru
        _
      %p2562 = scmp.le.s32.totalorder 2, %s33
      // Predicated region
      $region113: #{tpu_custom_call.1} parent=5 // pred_check
        %p2563 = pneg %p2562
      $region114: #{tpu_custom_call.1} parent=5 // pred_check_branch
        %2565 = sbr.rel (%p2563) target = $region116
      $region115: #{tpu_custom_call.1} parent=5 // pred_region
        %s2566 = ssub.s32 %s33, 2
        // Predicated region
        $region117: #{tpu_custom_call.1} parent=115 // pred_check
          %p2567 = pneg %p360
        $region118: #{tpu_custom_call.1} parent=115 // pred_check_branch
          %2569 = sbr.rel (%p2567) target = $region120
        $region119: #{tpu_custom_call.1} parent=115 // pred_region
          %s2570 = sand.u32 %s345, 1
          %s2571 = scalar_lea.sflag [#allocation4], %s2570
          %s2572 = sand.u32 %s345, 1
          %s2573 = smul.addr %s2572, 16
          %s2574 = scalar_lea.vmem [#allocation17], %s2573
          %2576 = dma.done %s2571, 256
        $region120: #{tpu_custom_call.1} parent=115 // pred_fallthru
          _
      $region116: #{tpu_custom_call.1} parent=5 // pred_fallthru
        _
    $region6: #{tpu_custom_call.1} parent=1 // loop_footer
      %s37 = sadd.s32 1, %s33
    $region7: #{tpu_custom_call.1} parent=1 // loop_footer_branch
      %32 = sbr.rel target = $region3
    $region8: #{tpu_custom_call.1} parent=1 // loop_exit
      _
    %2577 = vsyncpa [#allocation3], 1
    %s2578 = scalar_lea.sflag [#allocation3], 1
    %2579 = vsyncpa %s2578, 1
    %2580 = vsyncpa [#allocation6], 1
    %s2581 = scalar_lea.sflag [#allocation6], 1
    %2582 = vsyncpa %s2581, 1
    %2583 = vsyncpa [#allocation9], 1
    %s2584 = scalar_lea.sflag [#allocation9], 1
    %2585 = vsyncpa %s2584, 1
    %2586 = vsyncpa [#allocation12], 1
    %2587 = vsyncpa [#allocation15], 1
    %2588 = vsyncpa [#allocation4], 1
    %s2589 = scalar_lea.sflag [#allocation4], 1
    %2590 = vsyncpa %s2589, 1

</llo_original>
